<compile_context>
chip_gen: v7x
topology: tpu7x:2x2x1
jax: 0.10.0
libtpu: 0.0.40
codegen_flags: <defaults>
</compile_context>

<pallas_src>
from functools import partial

import jax
import jax.numpy as jnp
from jax.experimental import pallas as pl
from jax.experimental.pallas import tpu as pltpu


# ----------------------------- Pallas kernel ------------------------------ #
def _model2_kernel(T, B, H, S,
                   xp_ref,     # (T*B, 4H+S) f32  gathered, pre-projected rows
                   w_hh_ref,   # (H, 4H)     bf16 gate cols [i|f|o|2*g]
                   w_sc_ref,   # (H, S)      bf16
                   w_rd_ref,   # (1, S+1)    f32  [w_read0-w_read1 | b0-b1]
                   w_c1_ref,   # (H+1, H)    f32  [Wcls1 ; bias row]
                   w_c2_ref,   # (H+1, 2)    f32  [Wcls2 ; bias row]
                   class_ref,  # (B, 2)   out
                   loss_ref):  # (1, 1)   out
    f32, bf16 = jnp.float32, jnp.bfloat16
    G = 4 * H

    # loop-invariant weights (hoisted once, live in vregs)
    w_hh = w_hh_ref[...]                       # (H, 4H) bf16
    w_sc = w_sc_ref[...]                       # (H, S)  bf16
    wd = w_rd_ref[0:1, :S]                     # (1, S)
    bd = w_rd_ref[0:1, S:S + 1]                # (1, 1)

    h = jnp.zeros((B, H), f32)
    c = jnp.zeros((B, H), f32)
    loss = jnp.zeros((B, 1), f32)

    # Fully unrolled recurrence (T is a static Python int).  The read-head /
    # CE side branch of step t is off the h/c chain and schedules under the
    # recurrent dots of neighbouring steps.
    for t in range(T):
        xg = xp_ref[t * B:(t + 1) * B, :G]     # (B, 4H), lane-tile aligned
        xs = xp_ref[t * B:(t + 1) * B, G:]     # (B, S)

        gp = xg + jnp.dot(h.astype(bf16), w_hh, preferred_element_type=f32)
        svp = xs + jnp.dot(c.astype(bf16), w_sc, preferred_element_type=f32)

        # --- read head + CE vs [0.5, 0.5] (difference form) ----------------
        sv = jnp.maximum(svp, 0.0)                                  # (B, S)
        d = jnp.sum(sv * wd, axis=-1, keepdims=True) + bd           # (B, 1)
        ad = jnp.abs(d)
        loss = loss + 0.5 * ad + jnp.log(1.0 + jnp.exp(-ad))

        # --- LSTM cell: one sigmoid over [i|f|o|2g]; tanh(g)=2*sig(2g)-1 ----
        sg = jax.nn.sigmoid(gp)                                     # (B, 4H)
        i_g = sg[:, :H]
        f_g = sg[:, H:2 * H]
        o_g = sg[:, 2 * H:3 * H]
        g_g = 2.0 * sg[:, 3 * H:] - 1.0
        c = f_g * c + i_g * g_g
        h = o_g * jnp.tanh(c)

    # --- classifier head on the final cell state (fc_classifier(new_c)) ----
    hid = jnp.maximum(
        jnp.dot(c, w_c1_ref[:H, :], preferred_element_type=f32) + w_c1_ref[H:H + 1, :],
        0.0)                                                        # (B, H)
    lg2 = jnp.dot(hid, w_c2_ref[:H, :], preferred_element_type=f32) + w_c2_ref[H:H + 1, :]
    m2 = jnp.max(lg2, axis=-1, keepdims=True)
    e2 = jnp.exp(lg2 - m2)
    class_ref[...] = e2 / jnp.sum(e2, axis=-1, keepdims=True)

    # full_read_losses = (sum over time).mean over batch
    loss_ref[...] = jnp.mean(loss).reshape(1, 1)


# ------------------------ one-time parameter packing ----------------------- #
def prepare_model2_params(params):
    """Pack / transpose / bias-fold / embedding-fold all weights ONCE."""
    E = params["embedding"].shape[1]
    H = params["w_hh"].shape[1]
    S = params["w_state"].shape[0]
    f32, bf16 = jnp.float32, jnp.bfloat16
    hi = jax.lax.Precision.HIGHEST

    def reorder_scale_g(w_t):   # (K, 4H): columns [i|f|g|o] -> [i|f|o|2*g]
        return jnp.concatenate(
            [w_t[:, :2 * H], w_t[:, 3 * H:4 * H], 2.0 * w_t[:, 2 * H:3 * H]],
            axis=1)

    wih_t = reorder_scale_g(params["w_ih"].T.astype(f32))            # (E, 4H)
    whh_t = reorder_scale_g(params["w_hh"].T.astype(f32))            # (H, 4H)
    b_lstm = (params["b_ih"] + params["b_hh"]).astype(f32)           # (4H,)
    b_lstm = jnp.concatenate(
        [b_lstm[:2 * H], b_lstm[3 * H:4 * H], 2.0 * b_lstm[2 * H:3 * H]])

    # fc_relu_state weight over [x, c, old_action]; old_action == [1, 0] in
    # the supervised path -> fold column E+H into the bias, drop column E+H+1.
    w_state = params["w_state"].astype(f32)                          # (S, E+H+2)
    wse_t = w_state[:, :E].T                                         # (E, S)
    wsc_t = w_state[:, E:E + H].T                                    # (H, S)
    b_state = params["b_state"].astype(f32) + w_state[:, E + H]      # (S,)

    # fold the embedding matrix through the fused input projection:
    # table row v = embedding[v] @ [Wih | Wse] + [b_lstm | b_state]
    w_in = jnp.concatenate([wih_t, wse_t], axis=1)                   # (E, 4H+S)
    b_row = jnp.concatenate([b_lstm, b_state])                       # (4H+S,)
    table = (jnp.dot(params["embedding"].astype(f32), w_in, precision=hi)
             + b_row[None, :])                                       # (V, 4H+S)

    # read head difference form: d = sv @ (w0 - w1) + (b0 - b1)
    w_read = params["w_read"].astype(f32)                            # (2, S)
    b_read = params["b_read"].astype(f32)                            # (2,)
    w_rd = jnp.concatenate(
        [(w_read[0] - w_read[1]).reshape(1, S),
         (b_read[0] - b_read[1]).reshape(1, 1)], axis=1)             # (1, S+1)

    w_cls1_b = jnp.concatenate(
        [params["w_cls1"].T.astype(f32),
         params["b_cls1"].reshape(1, H).astype(f32)], axis=0)        # (H+1, H)
    w_cls2_b = jnp.concatenate(
        [params["w_cls2"].T.astype(f32),
         params["b_cls2"].reshape(1, 2).astype(f32)], axis=0)        # (H+1, 2)

    return {
        "table": table,
        "w_hh_bf": whh_t.astype(bf16),    # bf16 recurrent weights (single-pass MXU)
        "w_sc_bf": wsc_t.astype(bf16),
        "w_rd": w_rd,
        "w_cls1_b": w_cls1_b,
        "w_cls2_b": w_cls2_b,
    }


# ------------------------------- forward ----------------------------------- #
@jax.jit
def _forward_impl(features, table, w_hh_bf, w_sc_bf, w_rd, w_cls1_b, w_cls2_b):
    B, T = features.shape
    H = w_hh_bf.shape[0]
    S = w_sc_bf.shape[1]

    # gather pre-projected rows directly in time-major flattened order:
    # row t*B + b  <->  features[b, t]
    xp = jnp.take(table, features.T.reshape(-1), axis=0)             # (T*B, 4H+S)

    vmem = lambda: pl.BlockSpec(memory_space=pltpu.MemorySpace.VMEM)
    kern = partial(_model2_kernel, T, B, H, S)

    class_probs, loss = pl.pallas_call(
        kern,
        out_shape=(jax.ShapeDtypeStruct((B, 2), jnp.float32),
                   jax.ShapeDtypeStruct((1, 1), jnp.float32)),
        in_specs=[vmem() for _ in range(6)],
        out_specs=(vmem(), vmem()),
    )(xp, w_hh_bf, w_sc_bf, w_rd, w_cls1_b, w_cls2_b)
    return class_probs, loss[0, 0]


def model2_forward_supervised(features, prepared):
    """features: (B, T) int32. Returns (class_probabilities, full_read_losses)."""
    return _forward_impl(features, prepared["table"], prepared["w_hh_bf"],
                         prepared["w_sc_bf"], prepared["w_rd"],
                         prepared["w_cls1_b"], prepared["w_cls2_b"])


# --------------------------- pure-JAX reference ----------------------------- #
def _reference(features, params):
    emb = jnp.take(params["embedding"], features, axis=0)             # (B, T, E)
    B, T, E = emb.shape
    H = params["w_hh"].shape[1]
    h = jnp.zeros((B, H), jnp.float32)
    c = jnp.zeros((B, H), jnp.float32)
    old_action = jnp.concatenate([jnp.ones((B, 1)), jnp.zeros((B, 1))], axis=1)
    losses = []
    for t in range(T):
        x = emb[:, t, :]
        inp = jnp.concatenate([x, c, old_action], axis=1)
        sv = jax.nn.relu(inp @ params["w_state"].T + params["b_state"])
        probs = jax.nn.softmax(sv @ params["w_read"].T + params["b_read"], axis=-1)
        ce = -(0.5 * jnp.log(probs)).sum(axis=-1)
        losses.append(ce)
        gates = (x @ params["w_ih"].T + params["b_ih"]
                 + h @ params["w_hh"].T + params["b_hh"])
        i_g, f_g, g_g, o_g = jnp.split(gates, 4, axis=1)
        c = jax.nn.sigmoid(f_g) * c + jax.nn.sigmoid(i_g) * jnp.tanh(g_g)
        h = jax.nn.sigmoid(o_g) * jnp.tanh(c)
    hid = jax.nn.relu(c @ params["w_cls1"].T + params["b_cls1"])
    cls = jax.nn.softmax(hid @ params["w_cls2"].T + params["b_cls2"], axis=-1)
    loss = jnp.stack(losses, axis=0).sum(axis=0).mean()
    return cls, loss


# ---------------------------------- main ------------------------------------ #
if __name__ == "__main__":
    # vocab, word_embedding_size, lstm_hidden_size, state_vector_size
    VOCAB, E, H, S = 50, 16, 32, 24
    B, T = 8, 8                      # B=8 fills the 8-sublane vreg tile

    key = jax.random.PRNGKey(0)
    ks = jax.random.split(key, 12)
    sc = 0.1
    params = {
        "embedding": jax.random.normal(ks[0], (VOCAB, E), jnp.float32) * sc,
        "w_ih":   jax.random.normal(ks[1], (4 * H, E), jnp.float32) * sc,
        "w_hh":   jax.random.normal(ks[2], (4 * H, H), jnp.float32) * sc,
        "b_ih":   jax.random.normal(ks[3], (4 * H,), jnp.float32) * sc,
        "b_hh":   jax.random.normal(ks[4], (4 * H,), jnp.float32) * sc,
        "w_state": jax.random.normal(ks[5], (S, E + H + 2), jnp.float32) * sc,
        "b_state": jax.random.normal(ks[6], (S,), jnp.float32) * sc,
        "w_read": jax.random.normal(ks[7], (2, S), jnp.float32) * sc,
        "b_read": jax.random.normal(ks[8], (2,), jnp.float32) * sc,
        "w_cls1": jax.random.normal(ks[9], (H, H), jnp.float32) * sc,
        "b_cls1": jnp.zeros((H,), jnp.float32),
        "w_cls2": jax.random.normal(ks[10], (2, H), jnp.float32) * sc,
        "b_cls2": jnp.zeros((2,), jnp.float32),
    }
    features = jax.random.randint(ks[11], (B, T), 0, VOCAB, dtype=jnp.int32)

    prepared = prepare_model2_params(params)          # one-time packing
    cls_probs, read_loss = model2_forward_supervised(features, prepared)
    jax.block_until_ready((cls_probs, read_loss))

    ref_cls, ref_loss = _reference(features, params)
    assert cls_probs.shape == (B, 2)
    # tolerances relaxed vs. v1: the recurrent matmuls now use bf16 operands
    # (f32 accumulation), which introduces ~1e-3-scale relative drift.
    assert jnp.allclose(cls_probs, ref_cls, atol=5e-3, rtol=5e-3), (
        jnp.max(jnp.abs(cls_probs - ref_cls)))
    assert jnp.allclose(read_loss, ref_loss, atol=5e-3, rtol=5e-3), (
        abs(float(read_loss) - float(ref_loss)))

    print("KERNEL_OK")
</pallas_src>

<mosaic_0001>
module attributes {stable_mosaic.version = 11 : i64} {
  func.func @_model2_kernel(%arg0: memref<64x152xf32, #tpu.memory_space<vmem>>, %arg1: memref<32x128xbf16, #tpu.memory_space<vmem>>, %arg2: memref<32x24xbf16, #tpu.memory_space<vmem>>, %arg3: memref<1x25xf32, #tpu.memory_space<vmem>>, %arg4: memref<33x32xf32, #tpu.memory_space<vmem>>, %arg5: memref<33x2xf32, #tpu.memory_space<vmem>>, %arg6: memref<8x2xf32, #tpu.memory_space<vmem>>, %arg7: memref<1x1xf32, #tpu.memory_space<vmem>>) attributes {dimension_semantics = [], scalar_prefetch = 0 : i64, scratch_operands = 0 : i64, tpu.core_type = #tpu.core_type<tc>} {
    %c0 = arith.constant 0 : index
    %c0_0 = arith.constant 0 : index
    %0 = vector.load %arg1[%c0, %c0_0] : memref<32x128xbf16, #tpu.memory_space<vmem>>, vector<32x128xbf16>
    %c0_1 = arith.constant 0 : index
    %c0_2 = arith.constant 0 : index
    %1 = vector.load %arg2[%c0_1, %c0_2] : memref<32x24xbf16, #tpu.memory_space<vmem>>, vector<32x24xbf16>
    %c0_3 = arith.constant 0 : index
    %c0_4 = arith.constant 0 : index
    %2 = vector.load %arg3[%c0_3, %c0_4] : memref<1x25xf32, #tpu.memory_space<vmem>>, vector<1x24xf32>
    %c0_5 = arith.constant 0 : index
    %c24 = arith.constant 24 : index
    %3 = vector.load %arg3[%c0_5, %c24] : memref<1x25xf32, #tpu.memory_space<vmem>>, vector<1x1xf32>
    %cst = arith.constant 0.000000e+00 : f32
    %4 = vector.broadcast %cst : f32 to vector<8x32xf32>
    %cst_6 = arith.constant 0.000000e+00 : f32
    %5 = vector.broadcast %cst_6 : f32 to vector<8x32xf32>
    %cst_7 = arith.constant 0.000000e+00 : f32
    %6 = vector.broadcast %cst_7 : f32 to vector<8x1xf32>
    %c0_8 = arith.constant 0 : index
    %c0_9 = arith.constant 0 : index
    %7 = vector.load %arg0[%c0_8, %c0_9] : memref<64x152xf32, #tpu.memory_space<vmem>>, vector<8x128xf32>
    %c0_10 = arith.constant 0 : index
    %c128 = arith.constant 128 : index
    %8 = vector.load %arg0[%c0_10, %c128] : memref<64x152xf32, #tpu.memory_space<vmem>>, vector<8x24xf32>
    %9 = arith.truncf %4 : vector<8x32xf32> to vector<8x32xbf16>
    %cst_11 = arith.constant dense<0.000000e+00> : vector<8x128xf32>
    %10 = tpu.matmul %9, %0, %cst_11 {dimension_numbers = #tpu.dot_dimension_numbers<[1], [0], [0], [1], [0, 0, 1, 1], [], []>} : vector<8x32xbf16>, vector<32x128xbf16>, vector<8x128xf32> -> vector<8x128xf32>
    %11 = arith.addf %7, %10 : vector<8x128xf32>
    %12 = arith.truncf %5 : vector<8x32xf32> to vector<8x32xbf16>
    %cst_12 = arith.constant dense<0.000000e+00> : vector<8x24xf32>
    %13 = tpu.matmul %12, %1, %cst_12 {dimension_numbers = #tpu.dot_dimension_numbers<[1], [0], [0], [1], [0, 0, 1, 1], [], []>} : vector<8x32xbf16>, vector<32x24xbf16>, vector<8x24xf32> -> vector<8x24xf32>
    %14 = arith.addf %8, %13 : vector<8x24xf32>
    %cst_13 = arith.constant 0.000000e+00 : f32
    %15 = vector.broadcast %cst_13 : f32 to vector<8x24xf32>
    %16 = arith.maximumf %14, %15 : vector<8x24xf32>
    %17 = vector.broadcast %2 : vector<1x24xf32> to vector<8x24xf32>
    %18 = arith.mulf %16, %17 : vector<8x24xf32>
    %cst_14 = arith.constant dense<0.000000e+00> : vector<8xf32>
    %19 = vector.multi_reduction <add>, %18, %cst_14 [1] : vector<8x24xf32> to vector<8xf32>
    %20 = vector.shape_cast %19 : vector<8xf32> to vector<8x1xf32>
    %21 = vector.broadcast %3 : vector<1x1xf32> to vector<8x1xf32>
    %22 = arith.addf %20, %21 : vector<8x1xf32>
    %23 = math.absf %22 : vector<8x1xf32>
    %cst_15 = arith.constant 5.000000e-01 : f32
    %24 = vector.broadcast %cst_15 : f32 to vector<8x1xf32>
    %25 = arith.mulf %24, %23 : vector<8x1xf32>
    %26 = arith.addf %6, %25 : vector<8x1xf32>
    %cst_16 = arith.constant 0.000000e+00 : f32
    %27 = vector.broadcast %cst_16 : f32 to vector<8x1xf32>
    %28 = arith.subf %27, %23 : vector<8x1xf32>
    %29 = math.exp %28 : vector<8x1xf32>
    %cst_17 = arith.constant 1.000000e+00 : f32
    %30 = vector.broadcast %cst_17 : f32 to vector<8x1xf32>
    %31 = arith.addf %30, %29 : vector<8x1xf32>
    %32 = math.log %31 : vector<8x1xf32>
    %33 = arith.addf %26, %32 : vector<8x1xf32>
    %34 = arith.negf %11 : vector<8x128xf32>
    %35 = math.exp %34 : vector<8x128xf32>
    %cst_18 = arith.constant 1.000000e+00 : f32
    %36 = vector.broadcast %cst_18 : f32 to vector<8x128xf32>
    %37 = arith.addf %36, %35 : vector<8x128xf32>
    %38 = arith.divf %36, %37 : vector<8x128xf32>
    %39 = vector.extract_strided_slice %38 {offsets = [0, 0], sizes = [8, 32], strides = [1, 1]} : vector<8x128xf32> to vector<8x32xf32>
    %40 = vector.extract_strided_slice %38 {offsets = [0, 32], sizes = [8, 32], strides = [1, 1]} : vector<8x128xf32> to vector<8x32xf32>
    %41 = vector.extract_strided_slice %38 {offsets = [0, 64], sizes = [8, 32], strides = [1, 1]} : vector<8x128xf32> to vector<8x32xf32>
    %42 = vector.extract_strided_slice %38 {offsets = [0, 96], sizes = [8, 32], strides = [1, 1]} : vector<8x128xf32> to vector<8x32xf32>
    %cst_19 = arith.constant 2.000000e+00 : f32
    %43 = vector.broadcast %cst_19 : f32 to vector<8x32xf32>
    %44 = arith.mulf %43, %42 : vector<8x32xf32>
    %cst_20 = arith.constant 1.000000e+00 : f32
    %45 = vector.broadcast %cst_20 : f32 to vector<8x32xf32>
    %46 = arith.subf %44, %45 : vector<8x32xf32>
    %47 = arith.mulf %40, %5 : vector<8x32xf32>
    %48 = arith.mulf %39, %46 : vector<8x32xf32>
    %49 = arith.addf %47, %48 : vector<8x32xf32>
    %50 = math.tanh %49 : vector<8x32xf32>
    %51 = arith.mulf %41, %50 : vector<8x32xf32>
    %c8 = arith.constant 8 : index
    %c0_21 = arith.constant 0 : index
    %52 = vector.load %arg0[%c8, %c0_21] : memref<64x152xf32, #tpu.memory_space<vmem>>, vector<8x128xf32>
    %c8_22 = arith.constant 8 : index
    %c128_23 = arith.constant 128 : index
    %53 = vector.load %arg0[%c8_22, %c128_23] : memref<64x152xf32, #tpu.memory_space<vmem>>, vector<8x24xf32>
    %54 = arith.truncf %51 : vector<8x32xf32> to vector<8x32xbf16>
    %cst_24 = arith.constant dense<0.000000e+00> : vector<8x128xf32>
    %55 = tpu.matmul %54, %0, %cst_24 {dimension_numbers = #tpu.dot_dimension_numbers<[1], [0], [0], [1], [0, 0, 1, 1], [], []>} : vector<8x32xbf16>, vector<32x128xbf16>, vector<8x128xf32> -> vector<8x128xf32>
    %56 = arith.addf %52, %55 : vector<8x128xf32>
    %57 = arith.truncf %49 : vector<8x32xf32> to vector<8x32xbf16>
    %cst_25 = arith.constant dense<0.000000e+00> : vector<8x24xf32>
    %58 = tpu.matmul %57, %1, %cst_25 {dimension_numbers = #tpu.dot_dimension_numbers<[1], [0], [0], [1], [0, 0, 1, 1], [], []>} : vector<8x32xbf16>, vector<32x24xbf16>, vector<8x24xf32> -> vector<8x24xf32>
    %59 = arith.addf %53, %58 : vector<8x24xf32>
    %cst_26 = arith.constant 0.000000e+00 : f32
    %60 = vector.broadcast %cst_26 : f32 to vector<8x24xf32>
    %61 = arith.maximumf %59, %60 : vector<8x24xf32>
    %62 = vector.broadcast %2 : vector<1x24xf32> to vector<8x24xf32>
    %63 = arith.mulf %61, %62 : vector<8x24xf32>
    %cst_27 = arith.constant dense<0.000000e+00> : vector<8xf32>
    %64 = vector.multi_reduction <add>, %63, %cst_27 [1] : vector<8x24xf32> to vector<8xf32>
    %65 = vector.shape_cast %64 : vector<8xf32> to vector<8x1xf32>
    %66 = vector.broadcast %3 : vector<1x1xf32> to vector<8x1xf32>
    %67 = arith.addf %65, %66 : vector<8x1xf32>
    %68 = math.absf %67 : vector<8x1xf32>
    %cst_28 = arith.constant 5.000000e-01 : f32
    %69 = vector.broadcast %cst_28 : f32 to vector<8x1xf32>
    %70 = arith.mulf %69, %68 : vector<8x1xf32>
    %71 = arith.addf %33, %70 : vector<8x1xf32>
    %cst_29 = arith.constant 0.000000e+00 : f32
    %72 = vector.broadcast %cst_29 : f32 to vector<8x1xf32>
    %73 = arith.subf %72, %68 : vector<8x1xf32>
    %74 = math.exp %73 : vector<8x1xf32>
    %cst_30 = arith.constant 1.000000e+00 : f32
    %75 = vector.broadcast %cst_30 : f32 to vector<8x1xf32>
    %76 = arith.addf %75, %74 : vector<8x1xf32>
    %77 = math.log %76 : vector<8x1xf32>
    %78 = arith.addf %71, %77 : vector<8x1xf32>
    %79 = arith.negf %56 : vector<8x128xf32>
    %80 = math.exp %79 : vector<8x128xf32>
    %cst_31 = arith.constant 1.000000e+00 : f32
    %81 = vector.broadcast %cst_31 : f32 to vector<8x128xf32>
    %82 = arith.addf %81, %80 : vector<8x128xf32>
    %83 = arith.divf %81, %82 : vector<8x128xf32>
    %84 = vector.extract_strided_slice %83 {offsets = [0, 0], sizes = [8, 32], strides = [1, 1]} : vector<8x128xf32> to vector<8x32xf32>
    %85 = vector.extract_strided_slice %83 {offsets = [0, 32], sizes = [8, 32], strides = [1, 1]} : vector<8x128xf32> to vector<8x32xf32>
    %86 = vector.extract_strided_slice %83 {offsets = [0, 64], sizes = [8, 32], strides = [1, 1]} : vector<8x128xf32> to vector<8x32xf32>
    %87 = vector.extract_strided_slice %83 {offsets = [0, 96], sizes = [8, 32], strides = [1, 1]} : vector<8x128xf32> to vector<8x32xf32>
    %cst_32 = arith.constant 2.000000e+00 : f32
    %88 = vector.broadcast %cst_32 : f32 to vector<8x32xf32>
    %89 = arith.mulf %88, %87 : vector<8x32xf32>
    %cst_33 = arith.constant 1.000000e+00 : f32
    %90 = vector.broadcast %cst_33 : f32 to vector<8x32xf32>
    %91 = arith.subf %89, %90 : vector<8x32xf32>
    %92 = arith.mulf %85, %49 : vector<8x32xf32>
    %93 = arith.mulf %84, %91 : vector<8x32xf32>
    %94 = arith.addf %92, %93 : vector<8x32xf32>
    %95 = math.tanh %94 : vector<8x32xf32>
    %96 = arith.mulf %86, %95 : vector<8x32xf32>
    %c16 = arith.constant 16 : index
    %c0_34 = arith.constant 0 : index
    %97 = vector.load %arg0[%c16, %c0_34] : memref<64x152xf32, #tpu.memory_space<vmem>>, vector<8x128xf32>
    %c16_35 = arith.constant 16 : index
    %c128_36 = arith.constant 128 : index
    %98 = vector.load %arg0[%c16_35, %c128_36] : memref<64x152xf32, #tpu.memory_space<vmem>>, vector<8x24xf32>
    %99 = arith.truncf %96 : vector<8x32xf32> to vector<8x32xbf16>
    %cst_37 = arith.constant dense<0.000000e+00> : vector<8x128xf32>
    %100 = tpu.matmul %99, %0, %cst_37 {dimension_numbers = #tpu.dot_dimension_numbers<[1], [0], [0], [1], [0, 0, 1, 1], [], []>} : vector<8x32xbf16>, vector<32x128xbf16>, vector<8x128xf32> -> vector<8x128xf32>
    %101 = arith.addf %97, %100 : vector<8x128xf32>
    %102 = arith.truncf %94 : vector<8x32xf32> to vector<8x32xbf16>
    %cst_38 = arith.constant dense<0.000000e+00> : vector<8x24xf32>
    %103 = tpu.matmul %102, %1, %cst_38 {dimension_numbers = #tpu.dot_dimension_numbers<[1], [0], [0], [1], [0, 0, 1, 1], [], []>} : vector<8x32xbf16>, vector<32x24xbf16>, vector<8x24xf32> -> vector<8x24xf32>
    %104 = arith.addf %98, %103 : vector<8x24xf32>
    %cst_39 = arith.constant 0.000000e+00 : f32
    %105 = vector.broadcast %cst_39 : f32 to vector<8x24xf32>
    %106 = arith.maximumf %104, %105 : vector<8x24xf32>
    %107 = vector.broadcast %2 : vector<1x24xf32> to vector<8x24xf32>
    %108 = arith.mulf %106, %107 : vector<8x24xf32>
    %cst_40 = arith.constant dense<0.000000e+00> : vector<8xf32>
    %109 = vector.multi_reduction <add>, %108, %cst_40 [1] : vector<8x24xf32> to vector<8xf32>
    %110 = vector.shape_cast %109 : vector<8xf32> to vector<8x1xf32>
    %111 = vector.broadcast %3 : vector<1x1xf32> to vector<8x1xf32>
    %112 = arith.addf %110, %111 : vector<8x1xf32>
    %113 = math.absf %112 : vector<8x1xf32>
    %cst_41 = arith.constant 5.000000e-01 : f32
    %114 = vector.broadcast %cst_41 : f32 to vector<8x1xf32>
    %115 = arith.mulf %114, %113 : vector<8x1xf32>
    %116 = arith.addf %78, %115 : vector<8x1xf32>
    %cst_42 = arith.constant 0.000000e+00 : f32
    %117 = vector.broadcast %cst_42 : f32 to vector<8x1xf32>
    %118 = arith.subf %117, %113 : vector<8x1xf32>
    %119 = math.exp %118 : vector<8x1xf32>
    %cst_43 = arith.constant 1.000000e+00 : f32
    %120 = vector.broadcast %cst_43 : f32 to vector<8x1xf32>
    %121 = arith.addf %120, %119 : vector<8x1xf32>
    %122 = math.log %121 : vector<8x1xf32>
    %123 = arith.addf %116, %122 : vector<8x1xf32>
    %124 = arith.negf %101 : vector<8x128xf32>
    %125 = math.exp %124 : vector<8x128xf32>
    %cst_44 = arith.constant 1.000000e+00 : f32
    %126 = vector.broadcast %cst_44 : f32 to vector<8x128xf32>
    %127 = arith.addf %126, %125 : vector<8x128xf32>
    %128 = arith.divf %126, %127 : vector<8x128xf32>
    %129 = vector.extract_strided_slice %128 {offsets = [0, 0], sizes = [8, 32], strides = [1, 1]} : vector<8x128xf32> to vector<8x32xf32>
    %130 = vector.extract_strided_slice %128 {offsets = [0, 32], sizes = [8, 32], strides = [1, 1]} : vector<8x128xf32> to vector<8x32xf32>
    %131 = vector.extract_strided_slice %128 {offsets = [0, 64], sizes = [8, 32], strides = [1, 1]} : vector<8x128xf32> to vector<8x32xf32>
    %132 = vector.extract_strided_slice %128 {offsets = [0, 96], sizes = [8, 32], strides = [1, 1]} : vector<8x128xf32> to vector<8x32xf32>
    %cst_45 = arith.constant 2.000000e+00 : f32
    %133 = vector.broadcast %cst_45 : f32 to vector<8x32xf32>
    %134 = arith.mulf %133, %132 : vector<8x32xf32>
    %cst_46 = arith.constant 1.000000e+00 : f32
    %135 = vector.broadcast %cst_46 : f32 to vector<8x32xf32>
    %136 = arith.subf %134, %135 : vector<8x32xf32>
    %137 = arith.mulf %130, %94 : vector<8x32xf32>
    %138 = arith.mulf %129, %136 : vector<8x32xf32>
    %139 = arith.addf %137, %138 : vector<8x32xf32>
    %140 = math.tanh %139 : vector<8x32xf32>
    %141 = arith.mulf %131, %140 : vector<8x32xf32>
    %c24_47 = arith.constant 24 : index
    %c0_48 = arith.constant 0 : index
    %142 = vector.load %arg0[%c24_47, %c0_48] : memref<64x152xf32, #tpu.memory_space<vmem>>, vector<8x128xf32>
    %c24_49 = arith.constant 24 : index
    %c128_50 = arith.constant 128 : index
    %143 = vector.load %arg0[%c24_49, %c128_50] : memref<64x152xf32, #tpu.memory_space<vmem>>, vector<8x24xf32>
    %144 = arith.truncf %141 : vector<8x32xf32> to vector<8x32xbf16>
    %cst_51 = arith.constant dense<0.000000e+00> : vector<8x128xf32>
    %145 = tpu.matmul %144, %0, %cst_51 {dimension_numbers = #tpu.dot_dimension_numbers<[1], [0], [0], [1], [0, 0, 1, 1], [], []>} : vector<8x32xbf16>, vector<32x128xbf16>, vector<8x128xf32> -> vector<8x128xf32>
    %146 = arith.addf %142, %145 : vector<8x128xf32>
    %147 = arith.truncf %139 : vector<8x32xf32> to vector<8x32xbf16>
    %cst_52 = arith.constant dense<0.000000e+00> : vector<8x24xf32>
    %148 = tpu.matmul %147, %1, %cst_52 {dimension_numbers = #tpu.dot_dimension_numbers<[1], [0], [0], [1], [0, 0, 1, 1], [], []>} : vector<8x32xbf16>, vector<32x24xbf16>, vector<8x24xf32> -> vector<8x24xf32>
    %149 = arith.addf %143, %148 : vector<8x24xf32>
    %cst_53 = arith.constant 0.000000e+00 : f32
    %150 = vector.broadcast %cst_53 : f32 to vector<8x24xf32>
    %151 = arith.maximumf %149, %150 : vector<8x24xf32>
    %152 = vector.broadcast %2 : vector<1x24xf32> to vector<8x24xf32>
    %153 = arith.mulf %151, %152 : vector<8x24xf32>
    %cst_54 = arith.constant dense<0.000000e+00> : vector<8xf32>
    %154 = vector.multi_reduction <add>, %153, %cst_54 [1] : vector<8x24xf32> to vector<8xf32>
    %155 = vector.shape_cast %154 : vector<8xf32> to vector<8x1xf32>
    %156 = vector.broadcast %3 : vector<1x1xf32> to vector<8x1xf32>
    %157 = arith.addf %155, %156 : vector<8x1xf32>
    %158 = math.absf %157 : vector<8x1xf32>
    %cst_55 = arith.constant 5.000000e-01 : f32
    %159 = vector.broadcast %cst_55 : f32 to vector<8x1xf32>
    %160 = arith.mulf %159, %158 : vector<8x1xf32>
    %161 = arith.addf %123, %160 : vector<8x1xf32>
    %cst_56 = arith.constant 0.000000e+00 : f32
    %162 = vector.broadcast %cst_56 : f32 to vector<8x1xf32>
    %163 = arith.subf %162, %158 : vector<8x1xf32>
    %164 = math.exp %163 : vector<8x1xf32>
    %cst_57 = arith.constant 1.000000e+00 : f32
    %165 = vector.broadcast %cst_57 : f32 to vector<8x1xf32>
    %166 = arith.addf %165, %164 : vector<8x1xf32>
    %167 = math.log %166 : vector<8x1xf32>
    %168 = arith.addf %161, %167 : vector<8x1xf32>
    %169 = arith.negf %146 : vector<8x128xf32>
    %170 = math.exp %169 : vector<8x128xf32>
    %cst_58 = arith.constant 1.000000e+00 : f32
    %171 = vector.broadcast %cst_58 : f32 to vector<8x128xf32>
    %172 = arith.addf %171, %170 : vector<8x128xf32>
    %173 = arith.divf %171, %172 : vector<8x128xf32>
    %174 = vector.extract_strided_slice %173 {offsets = [0, 0], sizes = [8, 32], strides = [1, 1]} : vector<8x128xf32> to vector<8x32xf32>
    %175 = vector.extract_strided_slice %173 {offsets = [0, 32], sizes = [8, 32], strides = [1, 1]} : vector<8x128xf32> to vector<8x32xf32>
    %176 = vector.extract_strided_slice %173 {offsets = [0, 64], sizes = [8, 32], strides = [1, 1]} : vector<8x128xf32> to vector<8x32xf32>
    %177 = vector.extract_strided_slice %173 {offsets = [0, 96], sizes = [8, 32], strides = [1, 1]} : vector<8x128xf32> to vector<8x32xf32>
    %cst_59 = arith.constant 2.000000e+00 : f32
    %178 = vector.broadcast %cst_59 : f32 to vector<8x32xf32>
    %179 = arith.mulf %178, %177 : vector<8x32xf32>
    %cst_60 = arith.constant 1.000000e+00 : f32
    %180 = vector.broadcast %cst_60 : f32 to vector<8x32xf32>
    %181 = arith.subf %179, %180 : vector<8x32xf32>
    %182 = arith.mulf %175, %139 : vector<8x32xf32>
    %183 = arith.mulf %174, %181 : vector<8x32xf32>
    %184 = arith.addf %182, %183 : vector<8x32xf32>
    %185 = math.tanh %184 : vector<8x32xf32>
    %186 = arith.mulf %176, %185 : vector<8x32xf32>
    %c32 = arith.constant 32 : index
    %c0_61 = arith.constant 0 : index
    %187 = vector.load %arg0[%c32, %c0_61] : memref<64x152xf32, #tpu.memory_space<vmem>>, vector<8x128xf32>
    %c32_62 = arith.constant 32 : index
    %c128_63 = arith.constant 128 : index
    %188 = vector.load %arg0[%c32_62, %c128_63] : memref<64x152xf32, #tpu.memory_space<vmem>>, vector<8x24xf32>
    %189 = arith.truncf %186 : vector<8x32xf32> to vector<8x32xbf16>
    %cst_64 = arith.constant dense<0.000000e+00> : vector<8x128xf32>
    %190 = tpu.matmul %189, %0, %cst_64 {dimension_numbers = #tpu.dot_dimension_numbers<[1], [0], [0], [1], [0, 0, 1, 1], [], []>} : vector<8x32xbf16>, vector<32x128xbf16>, vector<8x128xf32> -> vector<8x128xf32>
    %191 = arith.addf %187, %190 : vector<8x128xf32>
    %192 = arith.truncf %184 : vector<8x32xf32> to vector<8x32xbf16>
    %cst_65 = arith.constant dense<0.000000e+00> : vector<8x24xf32>
    %193 = tpu.matmul %192, %1, %cst_65 {dimension_numbers = #tpu.dot_dimension_numbers<[1], [0], [0], [1], [0, 0, 1, 1], [], []>} : vector<8x32xbf16>, vector<32x24xbf16>, vector<8x24xf32> -> vector<8x24xf32>
    %194 = arith.addf %188, %193 : vector<8x24xf32>
    %cst_66 = arith.constant 0.000000e+00 : f32
    %195 = vector.broadcast %cst_66 : f32 to vector<8x24xf32>
    %196 = arith.maximumf %194, %195 : vector<8x24xf32>
    %197 = vector.broadcast %2 : vector<1x24xf32> to vector<8x24xf32>
    %198 = arith.mulf %196, %197 : vector<8x24xf32>
    %cst_67 = arith.constant dense<0.000000e+00> : vector<8xf32>
    %199 = vector.multi_reduction <add>, %198, %cst_67 [1] : vector<8x24xf32> to vector<8xf32>
    %200 = vector.shape_cast %199 : vector<8xf32> to vector<8x1xf32>
    %201 = vector.broadcast %3 : vector<1x1xf32> to vector<8x1xf32>
    %202 = arith.addf %200, %201 : vector<8x1xf32>
    %203 = math.absf %202 : vector<8x1xf32>
    %cst_68 = arith.constant 5.000000e-01 : f32
    %204 = vector.broadcast %cst_68 : f32 to vector<8x1xf32>
    %205 = arith.mulf %204, %203 : vector<8x1xf32>
    %206 = arith.addf %168, %205 : vector<8x1xf32>
    %cst_69 = arith.constant 0.000000e+00 : f32
    %207 = vector.broadcast %cst_69 : f32 to vector<8x1xf32>
    %208 = arith.subf %207, %203 : vector<8x1xf32>
    %209 = math.exp %208 : vector<8x1xf32>
    %cst_70 = arith.constant 1.000000e+00 : f32
    %210 = vector.broadcast %cst_70 : f32 to vector<8x1xf32>
    %211 = arith.addf %210, %209 : vector<8x1xf32>
    %212 = math.log %211 : vector<8x1xf32>
    %213 = arith.addf %206, %212 : vector<8x1xf32>
    %214 = arith.negf %191 : vector<8x128xf32>
    %215 = math.exp %214 : vector<8x128xf32>
    %cst_71 = arith.constant 1.000000e+00 : f32
    %216 = vector.broadcast %cst_71 : f32 to vector<8x128xf32>
    %217 = arith.addf %216, %215 : vector<8x128xf32>
    %218 = arith.divf %216, %217 : vector<8x128xf32>
    %219 = vector.extract_strided_slice %218 {offsets = [0, 0], sizes = [8, 32], strides = [1, 1]} : vector<8x128xf32> to vector<8x32xf32>
    %220 = vector.extract_strided_slice %218 {offsets = [0, 32], sizes = [8, 32], strides = [1, 1]} : vector<8x128xf32> to vector<8x32xf32>
    %221 = vector.extract_strided_slice %218 {offsets = [0, 64], sizes = [8, 32], strides = [1, 1]} : vector<8x128xf32> to vector<8x32xf32>
    %222 = vector.extract_strided_slice %218 {offsets = [0, 96], sizes = [8, 32], strides = [1, 1]} : vector<8x128xf32> to vector<8x32xf32>
    %cst_72 = arith.constant 2.000000e+00 : f32
    %223 = vector.broadcast %cst_72 : f32 to vector<8x32xf32>
    %224 = arith.mulf %223, %222 : vector<8x32xf32>
    %cst_73 = arith.constant 1.000000e+00 : f32
    %225 = vector.broadcast %cst_73 : f32 to vector<8x32xf32>
    %226 = arith.subf %224, %225 : vector<8x32xf32>
    %227 = arith.mulf %220, %184 : vector<8x32xf32>
    %228 = arith.mulf %219, %226 : vector<8x32xf32>
    %229 = arith.addf %227, %228 : vector<8x32xf32>
    %230 = math.tanh %229 : vector<8x32xf32>
    %231 = arith.mulf %221, %230 : vector<8x32xf32>
    %c40 = arith.constant 40 : index
    %c0_74 = arith.constant 0 : index
    %232 = vector.load %arg0[%c40, %c0_74] : memref<64x152xf32, #tpu.memory_space<vmem>>, vector<8x128xf32>
    %c40_75 = arith.constant 40 : index
    %c128_76 = arith.constant 128 : index
    %233 = vector.load %arg0[%c40_75, %c128_76] : memref<64x152xf32, #tpu.memory_space<vmem>>, vector<8x24xf32>
    %234 = arith.truncf %231 : vector<8x32xf32> to vector<8x32xbf16>
    %cst_77 = arith.constant dense<0.000000e+00> : vector<8x128xf32>
    %235 = tpu.matmul %234, %0, %cst_77 {dimension_numbers = #tpu.dot_dimension_numbers<[1], [0], [0], [1], [0, 0, 1, 1], [], []>} : vector<8x32xbf16>, vector<32x128xbf16>, vector<8x128xf32> -> vector<8x128xf32>
    %236 = arith.addf %232, %235 : vector<8x128xf32>
    %237 = arith.truncf %229 : vector<8x32xf32> to vector<8x32xbf16>
    %cst_78 = arith.constant dense<0.000000e+00> : vector<8x24xf32>
    %238 = tpu.matmul %237, %1, %cst_78 {dimension_numbers = #tpu.dot_dimension_numbers<[1], [0], [0], [1], [0, 0, 1, 1], [], []>} : vector<8x32xbf16>, vector<32x24xbf16>, vector<8x24xf32> -> vector<8x24xf32>
    %239 = arith.addf %233, %238 : vector<8x24xf32>
    %cst_79 = arith.constant 0.000000e+00 : f32
    %240 = vector.broadcast %cst_79 : f32 to vector<8x24xf32>
    %241 = arith.maximumf %239, %240 : vector<8x24xf32>
    %242 = vector.broadcast %2 : vector<1x24xf32> to vector<8x24xf32>
    %243 = arith.mulf %241, %242 : vector<8x24xf32>
    %cst_80 = arith.constant dense<0.000000e+00> : vector<8xf32>
    %244 = vector.multi_reduction <add>, %243, %cst_80 [1] : vector<8x24xf32> to vector<8xf32>
    %245 = vector.shape_cast %244 : vector<8xf32> to vector<8x1xf32>
    %246 = vector.broadcast %3 : vector<1x1xf32> to vector<8x1xf32>
    %247 = arith.addf %245, %246 : vector<8x1xf32>
    %248 = math.absf %247 : vector<8x1xf32>
    %cst_81 = arith.constant 5.000000e-01 : f32
    %249 = vector.broadcast %cst_81 : f32 to vector<8x1xf32>
    %250 = arith.mulf %249, %248 : vector<8x1xf32>
    %251 = arith.addf %213, %250 : vector<8x1xf32>
    %cst_82 = arith.constant 0.000000e+00 : f32
    %252 = vector.broadcast %cst_82 : f32 to vector<8x1xf32>
    %253 = arith.subf %252, %248 : vector<8x1xf32>
    %254 = math.exp %253 : vector<8x1xf32>
    %cst_83 = arith.constant 1.000000e+00 : f32
    %255 = vector.broadcast %cst_83 : f32 to vector<8x1xf32>
    %256 = arith.addf %255, %254 : vector<8x1xf32>
    %257 = math.log %256 : vector<8x1xf32>
    %258 = arith.addf %251, %257 : vector<8x1xf32>
    %259 = arith.negf %236 : vector<8x128xf32>
    %260 = math.exp %259 : vector<8x128xf32>
    %cst_84 = arith.constant 1.000000e+00 : f32
    %261 = vector.broadcast %cst_84 : f32 to vector<8x128xf32>
    %262 = arith.addf %261, %260 : vector<8x128xf32>
    %263 = arith.divf %261, %262 : vector<8x128xf32>
    %264 = vector.extract_strided_slice %263 {offsets = [0, 0], sizes = [8, 32], strides = [1, 1]} : vector<8x128xf32> to vector<8x32xf32>
    %265 = vector.extract_strided_slice %263 {offsets = [0, 32], sizes = [8, 32], strides = [1, 1]} : vector<8x128xf32> to vector<8x32xf32>
    %266 = vector.extract_strided_slice %263 {offsets = [0, 64], sizes = [8, 32], strides = [1, 1]} : vector<8x128xf32> to vector<8x32xf32>
    %267 = vector.extract_strided_slice %263 {offsets = [0, 96], sizes = [8, 32], strides = [1, 1]} : vector<8x128xf32> to vector<8x32xf32>
    %cst_85 = arith.constant 2.000000e+00 : f32
    %268 = vector.broadcast %cst_85 : f32 to vector<8x32xf32>
    %269 = arith.mulf %268, %267 : vector<8x32xf32>
    %cst_86 = arith.constant 1.000000e+00 : f32
    %270 = vector.broadcast %cst_86 : f32 to vector<8x32xf32>
    %271 = arith.subf %269, %270 : vector<8x32xf32>
    %272 = arith.mulf %265, %229 : vector<8x32xf32>
    %273 = arith.mulf %264, %271 : vector<8x32xf32>
    %274 = arith.addf %272, %273 : vector<8x32xf32>
    %275 = math.tanh %274 : vector<8x32xf32>
    %276 = arith.mulf %266, %275 : vector<8x32xf32>
    %c48 = arith.constant 48 : index
    %c0_87 = arith.constant 0 : index
    %277 = vector.load %arg0[%c48, %c0_87] : memref<64x152xf32, #tpu.memory_space<vmem>>, vector<8x128xf32>
    %c48_88 = arith.constant 48 : index
    %c128_89 = arith.constant 128 : index
    %278 = vector.load %arg0[%c48_88, %c128_89] : memref<64x152xf32, #tpu.memory_space<vmem>>, vector<8x24xf32>
    %279 = arith.truncf %276 : vector<8x32xf32> to vector<8x32xbf16>
    %cst_90 = arith.constant dense<0.000000e+00> : vector<8x128xf32>
    %280 = tpu.matmul %279, %0, %cst_90 {dimension_numbers = #tpu.dot_dimension_numbers<[1], [0], [0], [1], [0, 0, 1, 1], [], []>} : vector<8x32xbf16>, vector<32x128xbf16>, vector<8x128xf32> -> vector<8x128xf32>
    %281 = arith.addf %277, %280 : vector<8x128xf32>
    %282 = arith.truncf %274 : vector<8x32xf32> to vector<8x32xbf16>
    %cst_91 = arith.constant dense<0.000000e+00> : vector<8x24xf32>
    %283 = tpu.matmul %282, %1, %cst_91 {dimension_numbers = #tpu.dot_dimension_numbers<[1], [0], [0], [1], [0, 0, 1, 1], [], []>} : vector<8x32xbf16>, vector<32x24xbf16>, vector<8x24xf32> -> vector<8x24xf32>
    %284 = arith.addf %278, %283 : vector<8x24xf32>
    %cst_92 = arith.constant 0.000000e+00 : f32
    %285 = vector.broadcast %cst_92 : f32 to vector<8x24xf32>
    %286 = arith.maximumf %284, %285 : vector<8x24xf32>
    %287 = vector.broadcast %2 : vector<1x24xf32> to vector<8x24xf32>
    %288 = arith.mulf %286, %287 : vector<8x24xf32>
    %cst_93 = arith.constant dense<0.000000e+00> : vector<8xf32>
    %289 = vector.multi_reduction <add>, %288, %cst_93 [1] : vector<8x24xf32> to vector<8xf32>
    %290 = vector.shape_cast %289 : vector<8xf32> to vector<8x1xf32>
    %291 = vector.broadcast %3 : vector<1x1xf32> to vector<8x1xf32>
    %292 = arith.addf %290, %291 : vector<8x1xf32>
    %293 = math.absf %292 : vector<8x1xf32>
    %cst_94 = arith.constant 5.000000e-01 : f32
    %294 = vector.broadcast %cst_94 : f32 to vector<8x1xf32>
    %295 = arith.mulf %294, %293 : vector<8x1xf32>
    %296 = arith.addf %258, %295 : vector<8x1xf32>
    %cst_95 = arith.constant 0.000000e+00 : f32
    %297 = vector.broadcast %cst_95 : f32 to vector<8x1xf32>
    %298 = arith.subf %297, %293 : vector<8x1xf32>
    %299 = math.exp %298 : vector<8x1xf32>
    %cst_96 = arith.constant 1.000000e+00 : f32
    %300 = vector.broadcast %cst_96 : f32 to vector<8x1xf32>
    %301 = arith.addf %300, %299 : vector<8x1xf32>
    %302 = math.log %301 : vector<8x1xf32>
    %303 = arith.addf %296, %302 : vector<8x1xf32>
    %304 = arith.negf %281 : vector<8x128xf32>
    %305 = math.exp %304 : vector<8x128xf32>
    %cst_97 = arith.constant 1.000000e+00 : f32
    %306 = vector.broadcast %cst_97 : f32 to vector<8x128xf32>
    %307 = arith.addf %306, %305 : vector<8x128xf32>
    %308 = arith.divf %306, %307 : vector<8x128xf32>
    %309 = vector.extract_strided_slice %308 {offsets = [0, 0], sizes = [8, 32], strides = [1, 1]} : vector<8x128xf32> to vector<8x32xf32>
    %310 = vector.extract_strided_slice %308 {offsets = [0, 32], sizes = [8, 32], strides = [1, 1]} : vector<8x128xf32> to vector<8x32xf32>
    %311 = vector.extract_strided_slice %308 {offsets = [0, 64], sizes = [8, 32], strides = [1, 1]} : vector<8x128xf32> to vector<8x32xf32>
    %312 = vector.extract_strided_slice %308 {offsets = [0, 96], sizes = [8, 32], strides = [1, 1]} : vector<8x128xf32> to vector<8x32xf32>
    %cst_98 = arith.constant 2.000000e+00 : f32
    %313 = vector.broadcast %cst_98 : f32 to vector<8x32xf32>
    %314 = arith.mulf %313, %312 : vector<8x32xf32>
    %cst_99 = arith.constant 1.000000e+00 : f32
    %315 = vector.broadcast %cst_99 : f32 to vector<8x32xf32>
    %316 = arith.subf %314, %315 : vector<8x32xf32>
    %317 = arith.mulf %310, %274 : vector<8x32xf32>
    %318 = arith.mulf %309, %316 : vector<8x32xf32>
    %319 = arith.addf %317, %318 : vector<8x32xf32>
    %320 = math.tanh %319 : vector<8x32xf32>
    %321 = arith.mulf %311, %320 : vector<8x32xf32>
    %c56 = arith.constant 56 : index
    %c0_100 = arith.constant 0 : index
    %322 = vector.load %arg0[%c56, %c0_100] : memref<64x152xf32, #tpu.memory_space<vmem>>, vector<8x128xf32>
    %c56_101 = arith.constant 56 : index
    %c128_102 = arith.constant 128 : index
    %323 = vector.load %arg0[%c56_101, %c128_102] : memref<64x152xf32, #tpu.memory_space<vmem>>, vector<8x24xf32>
    %324 = arith.truncf %321 : vector<8x32xf32> to vector<8x32xbf16>
    %cst_103 = arith.constant dense<0.000000e+00> : vector<8x128xf32>
    %325 = tpu.matmul %324, %0, %cst_103 {dimension_numbers = #tpu.dot_dimension_numbers<[1], [0], [0], [1], [0, 0, 1, 1], [], []>} : vector<8x32xbf16>, vector<32x128xbf16>, vector<8x128xf32> -> vector<8x128xf32>
    %326 = arith.addf %322, %325 : vector<8x128xf32>
    %327 = arith.truncf %319 : vector<8x32xf32> to vector<8x32xbf16>
    %cst_104 = arith.constant dense<0.000000e+00> : vector<8x24xf32>
    %328 = tpu.matmul %327, %1, %cst_104 {dimension_numbers = #tpu.dot_dimension_numbers<[1], [0], [0], [1], [0, 0, 1, 1], [], []>} : vector<8x32xbf16>, vector<32x24xbf16>, vector<8x24xf32> -> vector<8x24xf32>
    %329 = arith.addf %323, %328 : vector<8x24xf32>
    %cst_105 = arith.constant 0.000000e+00 : f32
    %330 = vector.broadcast %cst_105 : f32 to vector<8x24xf32>
    %331 = arith.maximumf %329, %330 : vector<8x24xf32>
    %332 = vector.broadcast %2 : vector<1x24xf32> to vector<8x24xf32>
    %333 = arith.mulf %331, %332 : vector<8x24xf32>
    %cst_106 = arith.constant dense<0.000000e+00> : vector<8xf32>
    %334 = vector.multi_reduction <add>, %333, %cst_106 [1] : vector<8x24xf32> to vector<8xf32>
    %335 = vector.shape_cast %334 : vector<8xf32> to vector<8x1xf32>
    %336 = vector.broadcast %3 : vector<1x1xf32> to vector<8x1xf32>
    %337 = arith.addf %335, %336 : vector<8x1xf32>
    %338 = math.absf %337 : vector<8x1xf32>
    %cst_107 = arith.constant 5.000000e-01 : f32
    %339 = vector.broadcast %cst_107 : f32 to vector<8x1xf32>
    %340 = arith.mulf %339, %338 : vector<8x1xf32>
    %341 = arith.addf %303, %340 : vector<8x1xf32>
    %cst_108 = arith.constant 0.000000e+00 : f32
    %342 = vector.broadcast %cst_108 : f32 to vector<8x1xf32>
    %343 = arith.subf %342, %338 : vector<8x1xf32>
    %344 = math.exp %343 : vector<8x1xf32>
    %cst_109 = arith.constant 1.000000e+00 : f32
    %345 = vector.broadcast %cst_109 : f32 to vector<8x1xf32>
    %346 = arith.addf %345, %344 : vector<8x1xf32>
    %347 = math.log %346 : vector<8x1xf32>
    %348 = arith.addf %341, %347 : vector<8x1xf32>
    %349 = arith.negf %326 : vector<8x128xf32>
    %350 = math.exp %349 : vector<8x128xf32>
    %cst_110 = arith.constant 1.000000e+00 : f32
    %351 = vector.broadcast %cst_110 : f32 to vector<8x128xf32>
    %352 = arith.addf %351, %350 : vector<8x128xf32>
    %353 = arith.divf %351, %352 : vector<8x128xf32>
    %354 = vector.extract_strided_slice %353 {offsets = [0, 0], sizes = [8, 32], strides = [1, 1]} : vector<8x128xf32> to vector<8x32xf32>
    %355 = vector.extract_strided_slice %353 {offsets = [0, 32], sizes = [8, 32], strides = [1, 1]} : vector<8x128xf32> to vector<8x32xf32>
    %356 = vector.extract_strided_slice %353 {offsets = [0, 96], sizes = [8, 32], strides = [1, 1]} : vector<8x128xf32> to vector<8x32xf32>
    %cst_111 = arith.constant 2.000000e+00 : f32
    %357 = vector.broadcast %cst_111 : f32 to vector<8x32xf32>
    %358 = arith.mulf %357, %356 : vector<8x32xf32>
    %cst_112 = arith.constant 1.000000e+00 : f32
    %359 = vector.broadcast %cst_112 : f32 to vector<8x32xf32>
    %360 = arith.subf %358, %359 : vector<8x32xf32>
    %361 = arith.mulf %355, %319 : vector<8x32xf32>
    %362 = arith.mulf %354, %360 : vector<8x32xf32>
    %363 = arith.addf %361, %362 : vector<8x32xf32>
    %c0_113 = arith.constant 0 : index
    %c0_114 = arith.constant 0 : index
    %364 = vector.load %arg4[%c0_113, %c0_114] : memref<33x32xf32, #tpu.memory_space<vmem>>, vector<32x32xf32>
    %cst_115 = arith.constant dense<0.000000e+00> : vector<8x32xf32>
    %365 = tpu.matmul %363, %364, %cst_115 {dimension_numbers = #tpu.dot_dimension_numbers<[1], [0], [0], [1], [0, 0, 1, 1], [], []>} : vector<8x32xf32>, vector<32x32xf32>, vector<8x32xf32> -> vector<8x32xf32>
    %c32_116 = arith.constant 32 : index
    %c0_117 = arith.constant 0 : index
    %366 = vector.load %arg4[%c32_116, %c0_117] : memref<33x32xf32, #tpu.memory_space<vmem>>, vector<1x32xf32>
    %367 = vector.broadcast %366 : vector<1x32xf32> to vector<8x32xf32>
    %368 = arith.addf %365, %367 : vector<8x32xf32>
    %cst_118 = arith.constant 0.000000e+00 : f32
    %369 = vector.broadcast %cst_118 : f32 to vector<8x32xf32>
    %370 = arith.maximumf %368, %369 : vector<8x32xf32>
    %c0_119 = arith.constant 0 : index
    %c0_120 = arith.constant 0 : index
    %371 = vector.load %arg5[%c0_119, %c0_120] : memref<33x2xf32, #tpu.memory_space<vmem>>, vector<32x2xf32>
    %cst_121 = arith.constant dense<0.000000e+00> : vector<8x2xf32>
    %372 = tpu.matmul %370, %371, %cst_121 {dimension_numbers = #tpu.dot_dimension_numbers<[1], [0], [0], [1], [0, 0, 1, 1], [], []>} : vector<8x32xf32>, vector<32x2xf32>, vector<8x2xf32> -> vector<8x2xf32>
    %c32_122 = arith.constant 32 : index
    %c0_123 = arith.constant 0 : index
    %373 = vector.load %arg5[%c32_122, %c0_123] : memref<33x2xf32, #tpu.memory_space<vmem>>, vector<1x2xf32>
    %374 = vector.broadcast %373 : vector<1x2xf32> to vector<8x2xf32>
    %375 = arith.addf %372, %374 : vector<8x2xf32>
    %cst_124 = arith.constant dense<0xFF800000> : vector<8xf32>
    %376 = vector.multi_reduction <maximumf>, %375, %cst_124 [1] : vector<8x2xf32> to vector<8xf32>
    %377 = vector.shape_cast %376 : vector<8xf32> to vector<8x1xf32>
    %378 = vector.broadcast %377 : vector<8x1xf32> to vector<8x2xf32>
    %379 = arith.subf %375, %378 : vector<8x2xf32>
    %380 = math.exp %379 : vector<8x2xf32>
    %cst_125 = arith.constant dense<0.000000e+00> : vector<8xf32>
    %381 = vector.multi_reduction <add>, %380, %cst_125 [1] : vector<8x2xf32> to vector<8xf32>
    %382 = vector.shape_cast %381 : vector<8xf32> to vector<8x1xf32>
    %383 = vector.broadcast %382 : vector<8x1xf32> to vector<8x2xf32>
    %384 = arith.divf %380, %383 : vector<8x2xf32>
    %c0_126 = arith.constant 0 : index
    %c0_127 = arith.constant 0 : index
    %385 = vector.load %arg6[%c0_126, %c0_127] : memref<8x2xf32, #tpu.memory_space<vmem>>, vector<8x2xf32>
    tpu.vector_store %arg6[%c0_126, %c0_127], %384 {strides = array<i32>} : memref<8x2xf32, #tpu.memory_space<vmem>>, vector<8x2xf32>,
    %386 = vector.shape_cast %348 : vector<8x1xf32> to vector<1x8x1xf32>
    %cst_128 = arith.constant dense<0.000000e+00> : vector<1xf32>
    %387 = vector.multi_reduction <add>, %386, %cst_128 [1, 2] : vector<1x8x1xf32> to vector<1xf32>
    %388 = vector.shape_cast %387 : vector<1xf32> to vector<1x1x1xf32>
    %389 = vector.extract %388[0, 0, 0] : f32 from vector<1x1x1xf32>
    %cst_129 = arith.constant 8.000000e+00 : f32
    %390 = arith.divf %389, %cst_129 : f32
    %391 = vector.broadcast %390 : f32 to vector<1x1xf32>
    %c0_130 = arith.constant 0 : index
    %c0_131 = arith.constant 0 : index
    %392 = vector.load %arg7[%c0_130, %c0_131] : memref<1x1xf32, #tpu.memory_space<vmem>>, vector<1x1xf32>
    tpu.vector_store %arg7[%c0_130, %c0_131], %391 {strides = array<i32>} : memref<1x1xf32, #tpu.memory_space<vmem>>, vector<1x1xf32>,
    return
  }
}

</mosaic_0001>

<llo_original>
// kernel: _forward_impl.1
$region0: #{_forward_impl.1}
  #allocation0 [shape = 'u32[]', space=smem, size = 0x4, offset = 0x4, fixed_abs, tag = 'smem constant byte address 0x4 - core index']
  #allocation1 [shape = 'u32[144,128]{1,0:T(1,128)}', space=vmem, size = 0x12000, scoped, tag = 'internal scratch']
  %s0 = inlined_call_operand.vmem [shape: f32[64,152], index: 0, kind: input, shape index: {}]
  %s1 = inlined_call_operand.vmem [shape: bf16[32,128], index: 1, kind: input, shape index: {}]
  %s2 = inlined_call_operand.vmem [shape: bf16[32,24], index: 2, kind: input, shape index: {}]
  %s3 = inlined_call_operand.vmem [shape: f32[1,25], index: 3, kind: input, shape index: {}]
  %s4 = inlined_call_operand.vmem [shape: f32[33,32], index: 4, kind: input, shape index: {}]
  %s5 = inlined_call_operand.vmem [shape: f32[33,2], index: 5, kind: input, shape index: {}]
  %s6 = inlined_call_operand.vmem [shape: f32[8,2], index: 6, kind: output, shape index: {0}]
  %s7 = inlined_call_operand.hbm [shape: f32[1,1], index: 7, kind: output, shape index: {1}]
  %8 = xla_tuple %s6, %s7
  %s9 = sld [smem:[#allocation0]]
  $region42: #{_forward_impl.1} parent=0
    _
  %s11 = ssub.s32 1, %s9
  %s12 = scalar_select 0, %s11, %s9
  $region1: #{_forward_impl.1} parent=0
    #allocation2 [shape = 'u8[512]{0}', space=vmem, size = 0x400, scoped, tag = 'output window, operand 1, single buffered']
    #allocation3 [shape = 's32[1]{0}', space=sflag, size = 0x4, scoped, tag = 'scoped memory for _forward_impl.1']
    %13 = vsyncpa [#allocation3], 0
    // Predicated region
    $region2: #{_forward_impl.1} parent=1 // pred_check
      _
    $region3: #{_forward_impl.1} parent=1 // pred_check_branch
      %15 = sbr.rel (0) target = $region5
    $region4: #{_forward_impl.1} parent=1 // pred_region
      _
    $region5: #{_forward_impl.1} parent=1 // pred_fallthru
      _
    // Predicated region
    $region6: #{_forward_impl.1} parent=1 // pred_check
      _
    $region7: #{_forward_impl.1} parent=1 // pred_check_branch
      %17 = sbr.rel (0) target = $region9
    $region8: #{_forward_impl.1} parent=1 // pred_region
      _
    $region9: #{_forward_impl.1} parent=1 // pred_fallthru
      _
    // Predicated region
    $region10: #{_forward_impl.1} parent=1 // pred_check
      _
    $region11: #{_forward_impl.1} parent=1 // pred_check_branch
      %19 = sbr.rel (0) target = $region13
    $region12: #{_forward_impl.1} parent=1 // pred_region
      _
    $region13: #{_forward_impl.1} parent=1 // pred_fallthru
      _
    // Predicated region
    $region14: #{_forward_impl.1} parent=1 // pred_check
      _
    $region15: #{_forward_impl.1} parent=1 // pred_check_branch
      %21 = sbr.rel (0) target = $region17
    $region16: #{_forward_impl.1} parent=1 // pred_region
      _
    $region17: #{_forward_impl.1} parent=1 // pred_fallthru
      _
    // Predicated region
    $region18: #{_forward_impl.1} parent=1 // pred_check
      _
    $region19: #{_forward_impl.1} parent=1 // pred_check_branch
      %23 = sbr.rel (0) target = $region21
    $region20: #{_forward_impl.1} parent=1 // pred_region
      _
    $region21: #{_forward_impl.1} parent=1 // pred_fallthru
      _
    // Predicated region
    $region22: #{_forward_impl.1} parent=1 // pred_check
      _
    $region23: #{_forward_impl.1} parent=1 // pred_check_branch
      %25 = sbr.rel (0) target = $region25
    $region24: #{_forward_impl.1} parent=1 // pred_region
      _
    $region25: #{_forward_impl.1} parent=1 // pred_fallthru
      _
    %v27 = vld [vmem:[%s1] sm:$0xf]
    %v28 = vld [vmem:[%s1 + $0x4] sm:$0xf]
    %v29 = vld [vmem:[%s1 + $0x8] sm:$0xf]
    %v30 = vld [vmem:[%s1 + $0xc] sm:$0xf]
    %v31 = vld [vmem:[%s2] sm:$0xf]
    %v32 = vld [vmem:[%s2 + $0x4] sm:$0xf]
    %v33 = vld [vmem:[%s2 + $0x8] sm:$0xf]
    %v34 = vld [vmem:[%s2 + $0xc] sm:$0xf]
    %v35 = vld [vmem:[%s3] sm:$0x1]
    %v36 = vld [vmem:[%s0] sm:$0xff]
    %v37 = vld [vmem:[%s0 + $0x8] sm:$0xff]
    %v42 = vunpack.c.l.b16 %v27
    %v43 = vunpack.c.l.b16 %v28
    %v44 = vunpack.c.l.b16 %v29
    %v45 = vunpack.c.l.b16 %v30
    %v46 = vpack.c.b16 %v43, %v42
    %v47 = vpack.c.b16 %v45, %v44
    %vm50 = vcmask 261120
    %v52 = vsel %vm50, 0, 0
    %54 = vmatprep.subr.bf16.mxu0 0
    %55 = vmatpush1.bf16.msra.mxu0 %v46
    %56 = vmatprep.subr.bf16.mxu0 0
    %57 = vmatpush1.bf16.msra.mxu0 %v47
    %58 = vmatprep.subr.bf16.mxu0 0
    %59 = vmatpush1.bf16.msra.mxu0 0
    %60 = vmatprep.subr.bf16.mxu0 0
    %61 = vmatpush1.bf16.msra.mxu0 0
    %62 = vmatprep.subr.bf16.mxu0 0
    %63 = vmatpush1.bf16.msra.mxu0 0
    %64 = vmatprep.subr.bf16.mxu0 0
    %65 = vmatpush1.bf16.msra.mxu0 0
    %66 = vmatprep.subr.bf16.mxu0 0
    %67 = vmatpush1.bf16.msra.mxu0 0
    %68 = vmatprep.subr.bf16.mxu0 0
    %69 = vmatpush1.bf16.msra.mxu0 0
    %70 = vmatprep.subr.bf16.mxu0 0
    %71 = vmatpush1.bf16.msra.mxu0 0
    %72 = vmatprep.subr.bf16.mxu0 0
    %73 = vmatpush1.bf16.msra.mxu0 0
    %74 = vmatprep.subr.bf16.mxu0 0
    %75 = vmatpush1.bf16.msra.mxu0 0
    %76 = vmatprep.subr.bf16.mxu0 0
    %77 = vmatpush1.bf16.msra.mxu0 0
    %78 = vmatprep.subr.bf16.mxu0 0
    %79 = vmatpush1.bf16.msra.mxu0 0
    %80 = vmatprep.subr.bf16.mxu0 0
    %81 = vmatpush1.bf16.msra.mxu0 0
    %82 = vmatprep.subr.bf16.mxu0 0
    %83 = vmatpush1.bf16.msra.mxu0 0
    %84 = vmatprep.subr.bf16.mxu0 0
    %85 = vmatpush1.bf16.msra.mxu0 0
    %86 = vmatprep.mubr.bf16.mxu0 0
    %87 = vmatmul.mubr.bf16.gmra.mrb[0].mxu0 %v52
    %v88 = vpop.f32.mrb[0].mxu0
    %v89 = vadd.f32 0.0, %v88
    %v90 = vpop.f32.mrb[0].mxu0
    %v91 = vpop.f32.mrb[0].mxu0
    %v92 = vpop.f32.mrb[0].mxu0
    %93 = vdwg.mxu0
    %v94 = vadd.f32 %v36, %v89
    %v99 = vunpack.c.l.b16 %v31
    %v100 = vunpack.c.l.b16 %v32
    %v101 = vunpack.c.l.b16 %v33
    %v102 = vunpack.c.l.b16 %v34
    %v103 = vpack.c.b16 %v100, %v99
    %v104 = vpack.c.b16 %v102, %v101
    %107 = vmatprep.subr.bf16.mxu0 0
    %108 = vmatpush1.bf16.msra.mxu0 %v103
    %109 = vmatprep.subr.bf16.mxu0 0
    %110 = vmatpush1.bf16.msra.mxu0 %v104
    %111 = vmatprep.subr.bf16.mxu0 0
    %112 = vmatpush1.bf16.msra.mxu0 0
    %113 = vmatprep.subr.bf16.mxu0 0
    %114 = vmatpush1.bf16.msra.mxu0 0
    %115 = vmatprep.subr.bf16.mxu0 0
    %116 = vmatpush1.bf16.msra.mxu0 0
    %117 = vmatprep.subr.bf16.mxu0 0
    %118 = vmatpush1.bf16.msra.mxu0 0
    %119 = vmatprep.subr.bf16.mxu0 0
    %120 = vmatpush1.bf16.msra.mxu0 0
    %121 = vmatprep.subr.bf16.mxu0 0
    %122 = vmatpush1.bf16.msra.mxu0 0
    %123 = vmatprep.subr.bf16.mxu0 0
    %124 = vmatpush1.bf16.msra.mxu0 0
    %125 = vmatprep.subr.bf16.mxu0 0
    %126 = vmatpush1.bf16.msra.mxu0 0
    %127 = vmatprep.subr.bf16.mxu0 0
    %128 = vmatpush1.bf16.msra.mxu0 0
    %129 = vmatprep.subr.bf16.mxu0 0
    %130 = vmatpush1.bf16.msra.mxu0 0
    %131 = vmatprep.subr.bf16.mxu0 0
    %132 = vmatpush1.bf16.msra.mxu0 0
    %133 = vmatprep.subr.bf16.mxu0 0
    %134 = vmatpush1.bf16.msra.mxu0 0
    %135 = vmatprep.subr.bf16.mxu0 0
    %136 = vmatpush1.bf16.msra.mxu0 0
    %137 = vmatprep.subr.bf16.mxu0 0
    %138 = vmatpush1.bf16.msra.mxu0 0
    %139 = vmatprep.mubr.bf16.mxu0 0
    %140 = vmatmul.mubr.bf16.gmra.mrb[0].mxu0 %v52
    %v141 = vpop.f32.mrb[0].mxu0
    %v142 = vadd.f32 0.0, %v141
    %v143 = vpop.f32.mrb[0].mxu0
    %v144 = vpop.f32.mrb[0].mxu0
    %v145 = vpop.f32.mrb[0].mxu0
    %146 = vdwg.mxu0
    %v147 = vadd.f32 %v37, %v142
    %v148 = vmax.f32 %v147, 0.0
    %v150 = vlaneseq
    %v151 = vshrl.u32 %v150, 7
    %v152 = vsub.s32 0, %v151
    %v153 = vrot.slane %v35, %v152
    %v155 = vmul.f32 %v148, %v153
    %vm156 = vcmask 195584
    %v157 = vsel %vm156, %v155, 0.0
    %158 = vadd.xlane.f32.xlu0 %v157
    %v159 = vpop.xlane.xlu0 %158
    %v160 = vadd.f32 %v159, %v153
    %v161 = vand.u32 2147483647, %v160
    %v162 = vmul.f32 %v161, 0.5
    %v163 = vadd.f32 %v162, 0.0
    %v164 = vsub.f32 0.0, %v161
    %v165 = vmul.f32 %v164, 1.442695
    %v166 = vpow.pop %v165
    %v167 = vadd.f32 %v166, 1.0
    %v168 = vlog2.pop %v167
    %v169 = vmul.f32 %v168, 0.6931472
    %v170 = vadd.f32 %v163, %v169
    %v171 = vxor.u32 %v94, 2147483648
    %v172 = vmul.f32 %v171, 1.442695
    %v173 = vpow.pop %v172
    %v174 = vadd.f32 %v173, 1.0
    %v175 = vrcp.pop %v174
    %v176 = vmul.f32 1.0, %v175
    %v177 = vmul.f32 %v176, 2.0
    %v178 = vsub.f32 %v177, 1.0
    %v179 = vmul.f32 %v176, 0.0
    %181 = vrot.lane.b32.xlu0 %v178, 32
    %v182 = vpop.permute.xlu0 %181
    %v184 = vmul.f32 %v176, %v182
    %186 = vrot.lane.b32.xlu0 %v184, 32
    %v187 = vpop.permute.xlu0 %186
    %v189 = vadd.f32 %v179, %v187
    %v190 = vtanh.pop %v189
    %192 = vrot.lane.b32.xlu0 %v190, 32
    %v193 = vpop.permute.xlu0 %192
    %v195 = vmul.f32 %v176, %v193
    %v196 = vld [vmem:[%s0 + $0x10] sm:$0xff]
    %v197 = vld [vmem:[%s0 + $0x18] sm:$0xff]
    %v198 = vpack.c.bf16 %v195, %v195
    %200 = vrot.lane.b32.xlu0 %v198, 64
    %v201 = vpop.permute.xlu0 %200
    %v203 = vsel %vm50, %v201, 0
    %205 = vmatprep.subr.bf16.mxu0 0
    %206 = vmatpush1.bf16.msra.mxu0 %v46
    %207 = vmatprep.subr.bf16.mxu0 0
    %208 = vmatpush1.bf16.msra.mxu0 %v47
    %209 = vmatprep.subr.bf16.mxu0 0
    %210 = vmatpush1.bf16.msra.mxu0 0
    %211 = vmatprep.subr.bf16.mxu0 0
    %212 = vmatpush1.bf16.msra.mxu0 0
    %213 = vmatprep.subr.bf16.mxu0 0
    %214 = vmatpush1.bf16.msra.mxu0 0
    %215 = vmatprep.subr.bf16.mxu0 0
    %216 = vmatpush1.bf16.msra.mxu0 0
    %217 = vmatprep.subr.bf16.mxu0 0
    %218 = vmatpush1.bf16.msra.mxu0 0
    %219 = vmatprep.subr.bf16.mxu0 0
    %220 = vmatpush1.bf16.msra.mxu0 0
    %221 = vmatprep.subr.bf16.mxu0 0
    %222 = vmatpush1.bf16.msra.mxu0 0
    %223 = vmatprep.subr.bf16.mxu0 0
    %224 = vmatpush1.bf16.msra.mxu0 0
    %225 = vmatprep.subr.bf16.mxu0 0
    %226 = vmatpush1.bf16.msra.mxu0 0
    %227 = vmatprep.subr.bf16.mxu0 0
    %228 = vmatpush1.bf16.msra.mxu0 0
    %229 = vmatprep.subr.bf16.mxu0 0
    %230 = vmatpush1.bf16.msra.mxu0 0
    %231 = vmatprep.subr.bf16.mxu0 0
    %232 = vmatpush1.bf16.msra.mxu0 0
    %233 = vmatprep.subr.bf16.mxu0 0
    %234 = vmatpush1.bf16.msra.mxu0 0
    %235 = vmatprep.subr.bf16.mxu0 0
    %236 = vmatpush1.bf16.msra.mxu0 0
    %237 = vmatprep.mubr.bf16.mxu0 0
    %238 = vmatmul.mubr.bf16.gmra.mrb[0].mxu0 %v203
    %v239 = vpop.f32.mrb[0].mxu0
    %v240 = vadd.f32 0.0, %v239
    %v241 = vpop.f32.mrb[0].mxu0
    %v242 = vpop.f32.mrb[0].mxu0
    %v243 = vpop.f32.mrb[0].mxu0
    %244 = vdwg.mxu0
    %v245 = vadd.f32 %v196, %v240
    %v246 = vpack.c.bf16 %v189, %v189
    %248 = vrot.lane.b32.xlu0 %v246, 96
    %v249 = vpop.permute.xlu0 %248
    %v251 = vsel %vm50, %v249, 0
    %253 = vmatprep.subr.bf16.mxu0 0
    %254 = vmatpush1.bf16.msra.mxu0 %v103
    %255 = vmatprep.subr.bf16.mxu0 0
    %256 = vmatpush1.bf16.msra.mxu0 %v104
    %257 = vmatprep.subr.bf16.mxu0 0
    %258 = vmatpush1.bf16.msra.mxu0 0
    %259 = vmatprep.subr.bf16.mxu0 0
    %260 = vmatpush1.bf16.msra.mxu0 0
    %261 = vmatprep.subr.bf16.mxu0 0
    %262 = vmatpush1.bf16.msra.mxu0 0
    %263 = vmatprep.subr.bf16.mxu0 0
    %264 = vmatpush1.bf16.msra.mxu0 0
    %265 = vmatprep.subr.bf16.mxu0 0
    %266 = vmatpush1.bf16.msra.mxu0 0
    %267 = vmatprep.subr.bf16.mxu0 0
    %268 = vmatpush1.bf16.msra.mxu0 0
    %269 = vmatprep.subr.bf16.mxu0 0
    %270 = vmatpush1.bf16.msra.mxu0 0
    %271 = vmatprep.subr.bf16.mxu0 0
    %272 = vmatpush1.bf16.msra.mxu0 0
    %273 = vmatprep.subr.bf16.mxu0 0
    %274 = vmatpush1.bf16.msra.mxu0 0
    %275 = vmatprep.subr.bf16.mxu0 0
    %276 = vmatpush1.bf16.msra.mxu0 0
    %277 = vmatprep.subr.bf16.mxu0 0
    %278 = vmatpush1.bf16.msra.mxu0 0
    %279 = vmatprep.subr.bf16.mxu0 0
    %280 = vmatpush1.bf16.msra.mxu0 0
    %281 = vmatprep.subr.bf16.mxu0 0
    %282 = vmatpush1.bf16.msra.mxu0 0
    %283 = vmatprep.subr.bf16.mxu0 0
    %284 = vmatpush1.bf16.msra.mxu0 0
    %285 = vmatprep.mubr.bf16.mxu0 0
    %286 = vmatmul.mubr.bf16.gmra.mrb[0].mxu0 %v251
    %v287 = vpop.f32.mrb[0].mxu0
    %v288 = vadd.f32 0.0, %v287
    %v289 = vpop.f32.mrb[0].mxu0
    %v290 = vpop.f32.mrb[0].mxu0
    %v291 = vpop.f32.mrb[0].mxu0
    %292 = vdwg.mxu0
    %v293 = vadd.f32 %v197, %v288
    %v294 = vmax.f32 %v293, 0.0
    %v295 = vmul.f32 %v294, %v153
    %v296 = vsel %vm156, %v295, 0.0
    %297 = vadd.xlane.f32.xlu0 %v296
    %v298 = vpop.xlane.xlu0 %297
    %v299 = vadd.f32 %v298, %v153
    %v300 = vand.u32 2147483647, %v299
    %v301 = vmul.f32 %v300, 0.5
    %v302 = vadd.f32 %v170, %v301
    %v303 = vsub.f32 0.0, %v300
    %v304 = vmul.f32 %v303, 1.442695
    %v305 = vpow.pop %v304
    %v306 = vadd.f32 %v305, 1.0
    %v307 = vlog2.pop %v306
    %v308 = vmul.f32 %v307, 0.6931472
    %v309 = vadd.f32 %v302, %v308
    %v310 = vxor.u32 %v245, 2147483648
    %v311 = vmul.f32 %v310, 1.442695
    %v312 = vpow.pop %v311
    %v313 = vadd.f32 %v312, 1.0
    %v314 = vrcp.pop %v313
    %v315 = vmul.f32 1.0, %v314
    %v316 = vmul.f32 %v315, 2.0
    %v317 = vsub.f32 %v316, 1.0
    %v318 = vmul.f32 %v315, %v189
    %320 = vrot.lane.b32.xlu0 %v317, 32
    %v321 = vpop.permute.xlu0 %320
    %v323 = vmul.f32 %v315, %v321
    %325 = vrot.lane.b32.xlu0 %v323, 32
    %v326 = vpop.permute.xlu0 %325
    %v328 = vadd.f32 %v318, %v326
    %v329 = vtanh.pop %v328
    %331 = vrot.lane.b32.xlu0 %v329, 32
    %v332 = vpop.permute.xlu0 %331
    %v334 = vmul.f32 %v315, %v332
    %v335 = vld [vmem:[%s0 + $0x20] sm:$0xff]
    %v336 = vld [vmem:[%s0 + $0x28] sm:$0xff]
    %v337 = vpack.c.bf16 %v334, %v334
    %339 = vrot.lane.b32.xlu0 %v337, 64
    %v340 = vpop.permute.xlu0 %339
    %v342 = vsel %vm50, %v340, 0
    %344 = vmatprep.subr.bf16.mxu0 0
    %345 = vmatpush1.bf16.msra.mxu0 %v46
    %346 = vmatprep.subr.bf16.mxu0 0
    %347 = vmatpush1.bf16.msra.mxu0 %v47
    %348 = vmatprep.subr.bf16.mxu0 0
    %349 = vmatpush1.bf16.msra.mxu0 0
    %350 = vmatprep.subr.bf16.mxu0 0
    %351 = vmatpush1.bf16.msra.mxu0 0
    %352 = vmatprep.subr.bf16.mxu0 0
    %353 = vmatpush1.bf16.msra.mxu0 0
    %354 = vmatprep.subr.bf16.mxu0 0
    %355 = vmatpush1.bf16.msra.mxu0 0
    %356 = vmatprep.subr.bf16.mxu0 0
    %357 = vmatpush1.bf16.msra.mxu0 0
    %358 = vmatprep.subr.bf16.mxu0 0
    %359 = vmatpush1.bf16.msra.mxu0 0
    %360 = vmatprep.subr.bf16.mxu0 0
    %361 = vmatpush1.bf16.msra.mxu0 0
    %362 = vmatprep.subr.bf16.mxu0 0
    %363 = vmatpush1.bf16.msra.mxu0 0
    %364 = vmatprep.subr.bf16.mxu0 0
    %365 = vmatpush1.bf16.msra.mxu0 0
    %366 = vmatprep.subr.bf16.mxu0 0
    %367 = vmatpush1.bf16.msra.mxu0 0
    %368 = vmatprep.subr.bf16.mxu0 0
    %369 = vmatpush1.bf16.msra.mxu0 0
    %370 = vmatprep.subr.bf16.mxu0 0
    %371 = vmatpush1.bf16.msra.mxu0 0
    %372 = vmatprep.subr.bf16.mxu0 0
    %373 = vmatpush1.bf16.msra.mxu0 0
    %374 = vmatprep.subr.bf16.mxu0 0
    %375 = vmatpush1.bf16.msra.mxu0 0
    %376 = vmatprep.mubr.bf16.mxu0 0
    %377 = vmatmul.mubr.bf16.gmra.mrb[0].mxu0 %v342
    %v378 = vpop.f32.mrb[0].mxu0
    %v379 = vadd.f32 0.0, %v378
    %v380 = vpop.f32.mrb[0].mxu0
    %v381 = vpop.f32.mrb[0].mxu0
    %v382 = vpop.f32.mrb[0].mxu0
    %383 = vdwg.mxu0
    %v384 = vadd.f32 %v335, %v379
    %v385 = vpack.c.bf16 %v328, %v328
    %387 = vrot.lane.b32.xlu0 %v385, 96
    %v388 = vpop.permute.xlu0 %387
    %v390 = vsel %vm50, %v388, 0
    %392 = vmatprep.subr.bf16.mxu0 0
    %393 = vmatpush1.bf16.msra.mxu0 %v103
    %394 = vmatprep.subr.bf16.mxu0 0
    %395 = vmatpush1.bf16.msra.mxu0 %v104
    %396 = vmatprep.subr.bf16.mxu0 0
    %397 = vmatpush1.bf16.msra.mxu0 0
    %398 = vmatprep.subr.bf16.mxu0 0
    %399 = vmatpush1.bf16.msra.mxu0 0
    %400 = vmatprep.subr.bf16.mxu0 0
    %401 = vmatpush1.bf16.msra.mxu0 0
    %402 = vmatprep.subr.bf16.mxu0 0
    %403 = vmatpush1.bf16.msra.mxu0 0
    %404 = vmatprep.subr.bf16.mxu0 0
    %405 = vmatpush1.bf16.msra.mxu0 0
    %406 = vmatprep.subr.bf16.mxu0 0
    %407 = vmatpush1.bf16.msra.mxu0 0
    %408 = vmatprep.subr.bf16.mxu0 0
    %409 = vmatpush1.bf16.msra.mxu0 0
    %410 = vmatprep.subr.bf16.mxu0 0
    %411 = vmatpush1.bf16.msra.mxu0 0
    %412 = vmatprep.subr.bf16.mxu0 0
    %413 = vmatpush1.bf16.msra.mxu0 0
    %414 = vmatprep.subr.bf16.mxu0 0
    %415 = vmatpush1.bf16.msra.mxu0 0
    %416 = vmatprep.subr.bf16.mxu0 0
    %417 = vmatpush1.bf16.msra.mxu0 0
    %418 = vmatprep.subr.bf16.mxu0 0
    %419 = vmatpush1.bf16.msra.mxu0 0
    %420 = vmatprep.subr.bf16.mxu0 0
    %421 = vmatpush1.bf16.msra.mxu0 0
    %422 = vmatprep.subr.bf16.mxu0 0
    %423 = vmatpush1.bf16.msra.mxu0 0
    %424 = vmatprep.mubr.bf16.mxu0 0
    %425 = vmatmul.mubr.bf16.gmra.mrb[0].mxu0 %v390
    %v426 = vpop.f32.mrb[0].mxu0
    %v427 = vadd.f32 0.0, %v426
    %v428 = vpop.f32.mrb[0].mxu0
    %v429 = vpop.f32.mrb[0].mxu0
    %v430 = vpop.f32.mrb[0].mxu0
    %431 = vdwg.mxu0
    %v432 = vadd.f32 %v336, %v427
    %v433 = vmax.f32 %v432, 0.0
    %v434 = vmul.f32 %v433, %v153
    %v435 = vsel %vm156, %v434, 0.0
    %436 = vadd.xlane.f32.xlu0 %v435
    %v437 = vpop.xlane.xlu0 %436
    %v438 = vadd.f32 %v437, %v153
    %v439 = vand.u32 2147483647, %v438
    %v440 = vmul.f32 %v439, 0.5
    %v441 = vadd.f32 %v309, %v440
    %v442 = vsub.f32 0.0, %v439
    %v443 = vmul.f32 %v442, 1.442695
    %v444 = vpow.pop %v443
    %v445 = vadd.f32 %v444, 1.0
    %v446 = vlog2.pop %v445
    %v447 = vmul.f32 %v446, 0.6931472
    %v448 = vadd.f32 %v441, %v447
    %v449 = vxor.u32 %v384, 2147483648
    %v450 = vmul.f32 %v449, 1.442695
    %v451 = vpow.pop %v450
    %v452 = vadd.f32 %v451, 1.0
    %v453 = vrcp.pop %v452
    %v454 = vmul.f32 1.0, %v453
    %v455 = vmul.f32 %v454, 2.0
    %v456 = vsub.f32 %v455, 1.0
    %v457 = vmul.f32 %v454, %v328
    %459 = vrot.lane.b32.xlu0 %v456, 32
    %v460 = vpop.permute.xlu0 %459
    %v462 = vmul.f32 %v454, %v460
    %464 = vrot.lane.b32.xlu0 %v462, 32
    %v465 = vpop.permute.xlu0 %464
    %v467 = vadd.f32 %v457, %v465
    %v468 = vtanh.pop %v467
    %470 = vrot.lane.b32.xlu0 %v468, 32
    %v471 = vpop.permute.xlu0 %470
    %v473 = vmul.f32 %v454, %v471
    %v474 = vld [vmem:[%s0 + $0x30] sm:$0xff]
    %v475 = vld [vmem:[%s0 + $0x38] sm:$0xff]
    %v476 = vpack.c.bf16 %v473, %v473
    %478 = vrot.lane.b32.xlu0 %v476, 64
    %v479 = vpop.permute.xlu0 %478
    %v481 = vsel %vm50, %v479, 0
    %483 = vmatprep.subr.bf16.mxu0 0
    %484 = vmatpush1.bf16.msra.mxu0 %v46
    %485 = vmatprep.subr.bf16.mxu0 0
    %486 = vmatpush1.bf16.msra.mxu0 %v47
    %487 = vmatprep.subr.bf16.mxu0 0
    %488 = vmatpush1.bf16.msra.mxu0 0
    %489 = vmatprep.subr.bf16.mxu0 0
    %490 = vmatpush1.bf16.msra.mxu0 0
    %491 = vmatprep.subr.bf16.mxu0 0
    %492 = vmatpush1.bf16.msra.mxu0 0
    %493 = vmatprep.subr.bf16.mxu0 0
    %494 = vmatpush1.bf16.msra.mxu0 0
    %495 = vmatprep.subr.bf16.mxu0 0
    %496 = vmatpush1.bf16.msra.mxu0 0
    %497 = vmatprep.subr.bf16.mxu0 0
    %498 = vmatpush1.bf16.msra.mxu0 0
    %499 = vmatprep.subr.bf16.mxu0 0
    %500 = vmatpush1.bf16.msra.mxu0 0
    %501 = vmatprep.subr.bf16.mxu0 0
    %502 = vmatpush1.bf16.msra.mxu0 0
    %503 = vmatprep.subr.bf16.mxu0 0
    %504 = vmatpush1.bf16.msra.mxu0 0
    %505 = vmatprep.subr.bf16.mxu0 0
    %506 = vmatpush1.bf16.msra.mxu0 0
    %507 = vmatprep.subr.bf16.mxu0 0
    %508 = vmatpush1.bf16.msra.mxu0 0
    %509 = vmatprep.subr.bf16.mxu0 0
    %510 = vmatpush1.bf16.msra.mxu0 0
    %511 = vmatprep.subr.bf16.mxu0 0
    %512 = vmatpush1.bf16.msra.mxu0 0
    %513 = vmatprep.subr.bf16.mxu0 0
    %514 = vmatpush1.bf16.msra.mxu0 0
    %515 = vmatprep.mubr.bf16.mxu0 0
    %516 = vmatmul.mubr.bf16.gmra.mrb[0].mxu0 %v481
    %v517 = vpop.f32.mrb[0].mxu0
    %v518 = vadd.f32 0.0, %v517
    %v519 = vpop.f32.mrb[0].mxu0
    %v520 = vpop.f32.mrb[0].mxu0
    %v521 = vpop.f32.mrb[0].mxu0
    %522 = vdwg.mxu0
    %v523 = vadd.f32 %v474, %v518
    %v524 = vpack.c.bf16 %v467, %v467
    %526 = vrot.lane.b32.xlu0 %v524, 96
    %v527 = vpop.permute.xlu0 %526
    %v529 = vsel %vm50, %v527, 0
    %531 = vmatprep.subr.bf16.mxu0 0
    %532 = vmatpush1.bf16.msra.mxu0 %v103
    %533 = vmatprep.subr.bf16.mxu0 0
    %534 = vmatpush1.bf16.msra.mxu0 %v104
    %535 = vmatprep.subr.bf16.mxu0 0
    %536 = vmatpush1.bf16.msra.mxu0 0
    %537 = vmatprep.subr.bf16.mxu0 0
    %538 = vmatpush1.bf16.msra.mxu0 0
    %539 = vmatprep.subr.bf16.mxu0 0
    %540 = vmatpush1.bf16.msra.mxu0 0
    %541 = vmatprep.subr.bf16.mxu0 0
    %542 = vmatpush1.bf16.msra.mxu0 0
    %543 = vmatprep.subr.bf16.mxu0 0
    %544 = vmatpush1.bf16.msra.mxu0 0
    %545 = vmatprep.subr.bf16.mxu0 0
    %546 = vmatpush1.bf16.msra.mxu0 0
    %547 = vmatprep.subr.bf16.mxu0 0
    %548 = vmatpush1.bf16.msra.mxu0 0
    %549 = vmatprep.subr.bf16.mxu0 0
    %550 = vmatpush1.bf16.msra.mxu0 0
    %551 = vmatprep.subr.bf16.mxu0 0
    %552 = vmatpush1.bf16.msra.mxu0 0
    %553 = vmatprep.subr.bf16.mxu0 0
    %554 = vmatpush1.bf16.msra.mxu0 0
    %555 = vmatprep.subr.bf16.mxu0 0
    %556 = vmatpush1.bf16.msra.mxu0 0
    %557 = vmatprep.subr.bf16.mxu0 0
    %558 = vmatpush1.bf16.msra.mxu0 0
    %559 = vmatprep.subr.bf16.mxu0 0
    %560 = vmatpush1.bf16.msra.mxu0 0
    %561 = vmatprep.subr.bf16.mxu0 0
    %562 = vmatpush1.bf16.msra.mxu0 0
    %563 = vmatprep.mubr.bf16.mxu0 0
    %564 = vmatmul.mubr.bf16.gmra.mrb[0].mxu0 %v529
    %v565 = vpop.f32.mrb[0].mxu0
    %v566 = vadd.f32 0.0, %v565
    %v567 = vpop.f32.mrb[0].mxu0
    %v568 = vpop.f32.mrb[0].mxu0
    %v569 = vpop.f32.mrb[0].mxu0
    %570 = vdwg.mxu0
    %v571 = vadd.f32 %v475, %v566
    %v572 = vmax.f32 %v571, 0.0
    %v573 = vmul.f32 %v572, %v153
    %v574 = vsel %vm156, %v573, 0.0
    %575 = vadd.xlane.f32.xlu0 %v574
    %v576 = vpop.xlane.xlu0 %575
    %v577 = vadd.f32 %v576, %v153
    %v578 = vand.u32 2147483647, %v577
    %v579 = vmul.f32 %v578, 0.5
    %v580 = vadd.f32 %v448, %v579
    %v581 = vsub.f32 0.0, %v578
    %v582 = vmul.f32 %v581, 1.442695
    %v583 = vpow.pop %v582
    %v584 = vadd.f32 %v583, 1.0
    %v585 = vlog2.pop %v584
    %v586 = vmul.f32 %v585, 0.6931472
    %v587 = vadd.f32 %v580, %v586
    %v588 = vxor.u32 %v523, 2147483648
    %v589 = vmul.f32 %v588, 1.442695
    %v590 = vpow.pop %v589
    %v591 = vadd.f32 %v590, 1.0
    %v592 = vrcp.pop %v591
    %v593 = vmul.f32 1.0, %v592
    %v594 = vmul.f32 %v593, 2.0
    %v595 = vsub.f32 %v594, 1.0
    %v596 = vmul.f32 %v593, %v467
    %598 = vrot.lane.b32.xlu0 %v595, 32
    %v599 = vpop.permute.xlu0 %598
    %v601 = vmul.f32 %v593, %v599
    %603 = vrot.lane.b32.xlu0 %v601, 32
    %v604 = vpop.permute.xlu0 %603
    %v606 = vadd.f32 %v596, %v604
    %v607 = vtanh.pop %v606
    %609 = vrot.lane.b32.xlu0 %v607, 32
    %v610 = vpop.permute.xlu0 %609
    %v612 = vmul.f32 %v593, %v610
    %v613 = vld [vmem:[%s0 + $0x40] sm:$0xff]
    %v614 = vld [vmem:[%s0 + $0x48] sm:$0xff]
    %v615 = vpack.c.bf16 %v612, %v612
    %617 = vrot.lane.b32.xlu0 %v615, 64
    %v618 = vpop.permute.xlu0 %617
    %v620 = vsel %vm50, %v618, 0
    %622 = vmatprep.subr.bf16.mxu0 0
    %623 = vmatpush1.bf16.msra.mxu0 %v46
    %624 = vmatprep.subr.bf16.mxu0 0
    %625 = vmatpush1.bf16.msra.mxu0 %v47
    %626 = vmatprep.subr.bf16.mxu0 0
    %627 = vmatpush1.bf16.msra.mxu0 0
    %628 = vmatprep.subr.bf16.mxu0 0
    %629 = vmatpush1.bf16.msra.mxu0 0
    %630 = vmatprep.subr.bf16.mxu0 0
    %631 = vmatpush1.bf16.msra.mxu0 0
    %632 = vmatprep.subr.bf16.mxu0 0
    %633 = vmatpush1.bf16.msra.mxu0 0
    %634 = vmatprep.subr.bf16.mxu0 0
    %635 = vmatpush1.bf16.msra.mxu0 0
    %636 = vmatprep.subr.bf16.mxu0 0
    %637 = vmatpush1.bf16.msra.mxu0 0
    %638 = vmatprep.subr.bf16.mxu0 0
    %639 = vmatpush1.bf16.msra.mxu0 0
    %640 = vmatprep.subr.bf16.mxu0 0
    %641 = vmatpush1.bf16.msra.mxu0 0
    %642 = vmatprep.subr.bf16.mxu0 0
    %643 = vmatpush1.bf16.msra.mxu0 0
    %644 = vmatprep.subr.bf16.mxu0 0
    %645 = vmatpush1.bf16.msra.mxu0 0
    %646 = vmatprep.subr.bf16.mxu0 0
    %647 = vmatpush1.bf16.msra.mxu0 0
    %648 = vmatprep.subr.bf16.mxu0 0
    %649 = vmatpush1.bf16.msra.mxu0 0
    %650 = vmatprep.subr.bf16.mxu0 0
    %651 = vmatpush1.bf16.msra.mxu0 0
    %652 = vmatprep.subr.bf16.mxu0 0
    %653 = vmatpush1.bf16.msra.mxu0 0
    %654 = vmatprep.mubr.bf16.mxu0 0
    %655 = vmatmul.mubr.bf16.gmra.mrb[0].mxu0 %v620
    %v656 = vpop.f32.mrb[0].mxu0
    %v657 = vadd.f32 0.0, %v656
    %v658 = vpop.f32.mrb[0].mxu0
    %v659 = vpop.f32.mrb[0].mxu0
    %v660 = vpop.f32.mrb[0].mxu0
    %661 = vdwg.mxu0
    %v662 = vadd.f32 %v613, %v657
    %v663 = vpack.c.bf16 %v606, %v606
    %665 = vrot.lane.b32.xlu0 %v663, 96
    %v666 = vpop.permute.xlu0 %665
    %v668 = vsel %vm50, %v666, 0
    %670 = vmatprep.subr.bf16.mxu0 0
    %671 = vmatpush1.bf16.msra.mxu0 %v103
    %672 = vmatprep.subr.bf16.mxu0 0
    %673 = vmatpush1.bf16.msra.mxu0 %v104
    %674 = vmatprep.subr.bf16.mxu0 0
    %675 = vmatpush1.bf16.msra.mxu0 0
    %676 = vmatprep.subr.bf16.mxu0 0
    %677 = vmatpush1.bf16.msra.mxu0 0
    %678 = vmatprep.subr.bf16.mxu0 0
    %679 = vmatpush1.bf16.msra.mxu0 0
    %680 = vmatprep.subr.bf16.mxu0 0
    %681 = vmatpush1.bf16.msra.mxu0 0
    %682 = vmatprep.subr.bf16.mxu0 0
    %683 = vmatpush1.bf16.msra.mxu0 0
    %684 = vmatprep.subr.bf16.mxu0 0
    %685 = vmatpush1.bf16.msra.mxu0 0
    %686 = vmatprep.subr.bf16.mxu0 0
    %687 = vmatpush1.bf16.msra.mxu0 0
    %688 = vmatprep.subr.bf16.mxu0 0
    %689 = vmatpush1.bf16.msra.mxu0 0
    %690 = vmatprep.subr.bf16.mxu0 0
    %691 = vmatpush1.bf16.msra.mxu0 0
    %692 = vmatprep.subr.bf16.mxu0 0
    %693 = vmatpush1.bf16.msra.mxu0 0
    %694 = vmatprep.subr.bf16.mxu0 0
    %695 = vmatpush1.bf16.msra.mxu0 0
    %696 = vmatprep.subr.bf16.mxu0 0
    %697 = vmatpush1.bf16.msra.mxu0 0
    %698 = vmatprep.subr.bf16.mxu0 0
    %699 = vmatpush1.bf16.msra.mxu0 0
    %700 = vmatprep.subr.bf16.mxu0 0
    %701 = vmatpush1.bf16.msra.mxu0 0
    %702 = vmatprep.mubr.bf16.mxu0 0
    %703 = vmatmul.mubr.bf16.gmra.mrb[0].mxu0 %v668
    %v704 = vpop.f32.mrb[0].mxu0
    %v705 = vadd.f32 0.0, %v704
    %v706 = vpop.f32.mrb[0].mxu0
    %v707 = vpop.f32.mrb[0].mxu0
    %v708 = vpop.f32.mrb[0].mxu0
    %709 = vdwg.mxu0
    %v710 = vadd.f32 %v614, %v705
    %v711 = vmax.f32 %v710, 0.0
    %v712 = vmul.f32 %v711, %v153
    %v713 = vsel %vm156, %v712, 0.0
    %714 = vadd.xlane.f32.xlu0 %v713
    %v715 = vpop.xlane.xlu0 %714
    %v716 = vadd.f32 %v715, %v153
    %v717 = vand.u32 2147483647, %v716
    %v718 = vmul.f32 %v717, 0.5
    %v719 = vadd.f32 %v587, %v718
    %v720 = vsub.f32 0.0, %v717
    %v721 = vmul.f32 %v720, 1.442695
    %v722 = vpow.pop %v721
    %v723 = vadd.f32 %v722, 1.0
    %v724 = vlog2.pop %v723
    %v725 = vmul.f32 %v724, 0.6931472
    %v726 = vadd.f32 %v719, %v725
    %v727 = vxor.u32 %v662, 2147483648
    %v728 = vmul.f32 %v727, 1.442695
    %v729 = vpow.pop %v728
    %v730 = vadd.f32 %v729, 1.0
    %v731 = vrcp.pop %v730
    %v732 = vmul.f32 1.0, %v731
    %v733 = vmul.f32 %v732, 2.0
    %v734 = vsub.f32 %v733, 1.0
    %v735 = vmul.f32 %v732, %v606
    %737 = vrot.lane.b32.xlu0 %v734, 32
    %v738 = vpop.permute.xlu0 %737
    %v740 = vmul.f32 %v732, %v738
    %742 = vrot.lane.b32.xlu0 %v740, 32
    %v743 = vpop.permute.xlu0 %742
    %v745 = vadd.f32 %v735, %v743
    %v746 = vtanh.pop %v745
    %748 = vrot.lane.b32.xlu0 %v746, 32
    %v749 = vpop.permute.xlu0 %748
    %v751 = vmul.f32 %v732, %v749
    %v752 = vld [vmem:[%s0 + $0x50] sm:$0xff]
    %v753 = vld [vmem:[%s0 + $0x58] sm:$0xff]
    %v754 = vpack.c.bf16 %v751, %v751
    %756 = vrot.lane.b32.xlu0 %v754, 64
    %v757 = vpop.permute.xlu0 %756
    %v759 = vsel %vm50, %v757, 0
    %761 = vmatprep.subr.bf16.mxu0 0
    %762 = vmatpush1.bf16.msra.mxu0 %v46
    %763 = vmatprep.subr.bf16.mxu0 0
    %764 = vmatpush1.bf16.msra.mxu0 %v47
    %765 = vmatprep.subr.bf16.mxu0 0
    %766 = vmatpush1.bf16.msra.mxu0 0
    %767 = vmatprep.subr.bf16.mxu0 0
    %768 = vmatpush1.bf16.msra.mxu0 0
    %769 = vmatprep.subr.bf16.mxu0 0
    %770 = vmatpush1.bf16.msra.mxu0 0
    %771 = vmatprep.subr.bf16.mxu0 0
    %772 = vmatpush1.bf16.msra.mxu0 0
    %773 = vmatprep.subr.bf16.mxu0 0
    %774 = vmatpush1.bf16.msra.mxu0 0
    %775 = vmatprep.subr.bf16.mxu0 0
    %776 = vmatpush1.bf16.msra.mxu0 0
    %777 = vmatprep.subr.bf16.mxu0 0
    %778 = vmatpush1.bf16.msra.mxu0 0
    %779 = vmatprep.subr.bf16.mxu0 0
    %780 = vmatpush1.bf16.msra.mxu0 0
    %781 = vmatprep.subr.bf16.mxu0 0
    %782 = vmatpush1.bf16.msra.mxu0 0
    %783 = vmatprep.subr.bf16.mxu0 0
    %784 = vmatpush1.bf16.msra.mxu0 0
    %785 = vmatprep.subr.bf16.mxu0 0
    %786 = vmatpush1.bf16.msra.mxu0 0
    %787 = vmatprep.subr.bf16.mxu0 0
    %788 = vmatpush1.bf16.msra.mxu0 0
    %789 = vmatprep.subr.bf16.mxu0 0
    %790 = vmatpush1.bf16.msra.mxu0 0
    %791 = vmatprep.subr.bf16.mxu0 0
    %792 = vmatpush1.bf16.msra.mxu0 0
    %793 = vmatprep.mubr.bf16.mxu0 0
    %794 = vmatmul.mubr.bf16.gmra.mrb[0].mxu0 %v759
    %v795 = vpop.f32.mrb[0].mxu0
    %v796 = vadd.f32 0.0, %v795
    %v797 = vpop.f32.mrb[0].mxu0
    %v798 = vpop.f32.mrb[0].mxu0
    %v799 = vpop.f32.mrb[0].mxu0
    %800 = vdwg.mxu0
    %v801 = vadd.f32 %v752, %v796
    %v802 = vpack.c.bf16 %v745, %v745
    %804 = vrot.lane.b32.xlu0 %v802, 96
    %v805 = vpop.permute.xlu0 %804
    %v807 = vsel %vm50, %v805, 0
    %809 = vmatprep.subr.bf16.mxu0 0
    %810 = vmatpush1.bf16.msra.mxu0 %v103
    %811 = vmatprep.subr.bf16.mxu0 0
    %812 = vmatpush1.bf16.msra.mxu0 %v104
    %813 = vmatprep.subr.bf16.mxu0 0
    %814 = vmatpush1.bf16.msra.mxu0 0
    %815 = vmatprep.subr.bf16.mxu0 0
    %816 = vmatpush1.bf16.msra.mxu0 0
    %817 = vmatprep.subr.bf16.mxu0 0
    %818 = vmatpush1.bf16.msra.mxu0 0
    %819 = vmatprep.subr.bf16.mxu0 0
    %820 = vmatpush1.bf16.msra.mxu0 0
    %821 = vmatprep.subr.bf16.mxu0 0
    %822 = vmatpush1.bf16.msra.mxu0 0
    %823 = vmatprep.subr.bf16.mxu0 0
    %824 = vmatpush1.bf16.msra.mxu0 0
    %825 = vmatprep.subr.bf16.mxu0 0
    %826 = vmatpush1.bf16.msra.mxu0 0
    %827 = vmatprep.subr.bf16.mxu0 0
    %828 = vmatpush1.bf16.msra.mxu0 0
    %829 = vmatprep.subr.bf16.mxu0 0
    %830 = vmatpush1.bf16.msra.mxu0 0
    %831 = vmatprep.subr.bf16.mxu0 0
    %832 = vmatpush1.bf16.msra.mxu0 0
    %833 = vmatprep.subr.bf16.mxu0 0
    %834 = vmatpush1.bf16.msra.mxu0 0
    %835 = vmatprep.subr.bf16.mxu0 0
    %836 = vmatpush1.bf16.msra.mxu0 0
    %837 = vmatprep.subr.bf16.mxu0 0
    %838 = vmatpush1.bf16.msra.mxu0 0
    %839 = vmatprep.subr.bf16.mxu0 0
    %840 = vmatpush1.bf16.msra.mxu0 0
    %841 = vmatprep.mubr.bf16.mxu0 0
    %842 = vmatmul.mubr.bf16.gmra.mrb[0].mxu0 %v807
    %v843 = vpop.f32.mrb[0].mxu0
    %v844 = vadd.f32 0.0, %v843
    %v845 = vpop.f32.mrb[0].mxu0
    %v846 = vpop.f32.mrb[0].mxu0
    %v847 = vpop.f32.mrb[0].mxu0
    %848 = vdwg.mxu0
    %v849 = vadd.f32 %v753, %v844
    %v850 = vmax.f32 %v849, 0.0
    %v851 = vmul.f32 %v850, %v153
    %v852 = vsel %vm156, %v851, 0.0
    %853 = vadd.xlane.f32.xlu0 %v852
    %v854 = vpop.xlane.xlu0 %853
    %v855 = vadd.f32 %v854, %v153
    %v856 = vand.u32 2147483647, %v855
    %v857 = vmul.f32 %v856, 0.5
    %v858 = vadd.f32 %v726, %v857
    %v859 = vsub.f32 0.0, %v856
    %v860 = vmul.f32 %v859, 1.442695
    %v861 = vpow.pop %v860
    %v862 = vadd.f32 %v861, 1.0
    %v863 = vlog2.pop %v862
    %v864 = vmul.f32 %v863, 0.6931472
    %v865 = vadd.f32 %v858, %v864
    %v866 = vxor.u32 %v801, 2147483648
    %v867 = vmul.f32 %v866, 1.442695
    %v868 = vpow.pop %v867
    %v869 = vadd.f32 %v868, 1.0
    %v870 = vrcp.pop %v869
    %v871 = vmul.f32 1.0, %v870
    %v872 = vmul.f32 %v871, 2.0
    %v873 = vsub.f32 %v872, 1.0
    %v874 = vmul.f32 %v871, %v745
    %876 = vrot.lane.b32.xlu0 %v873, 32
    %v877 = vpop.permute.xlu0 %876
    %v879 = vmul.f32 %v871, %v877
    %881 = vrot.lane.b32.xlu0 %v879, 32
    %v882 = vpop.permute.xlu0 %881
    %v884 = vadd.f32 %v874, %v882
    %v885 = vtanh.pop %v884
    %887 = vrot.lane.b32.xlu0 %v885, 32
    %v888 = vpop.permute.xlu0 %887
    %v890 = vmul.f32 %v871, %v888
    %v891 = vld [vmem:[%s0 + $0x60] sm:$0xff]
    %v892 = vld [vmem:[%s0 + $0x68] sm:$0xff]
    %v893 = vpack.c.bf16 %v890, %v890
    %895 = vrot.lane.b32.xlu0 %v893, 64
    %v896 = vpop.permute.xlu0 %895
    %v898 = vsel %vm50, %v896, 0
    %900 = vmatprep.subr.bf16.mxu0 0
    %901 = vmatpush1.bf16.msra.mxu0 %v46
    %902 = vmatprep.subr.bf16.mxu0 0
    %903 = vmatpush1.bf16.msra.mxu0 %v47
    %904 = vmatprep.subr.bf16.mxu0 0
    %905 = vmatpush1.bf16.msra.mxu0 0
    %906 = vmatprep.subr.bf16.mxu0 0
    %907 = vmatpush1.bf16.msra.mxu0 0
    %908 = vmatprep.subr.bf16.mxu0 0
    %909 = vmatpush1.bf16.msra.mxu0 0
    %910 = vmatprep.subr.bf16.mxu0 0
    %911 = vmatpush1.bf16.msra.mxu0 0
    %912 = vmatprep.subr.bf16.mxu0 0
    %913 = vmatpush1.bf16.msra.mxu0 0
    %914 = vmatprep.subr.bf16.mxu0 0
    %915 = vmatpush1.bf16.msra.mxu0 0
    %916 = vmatprep.subr.bf16.mxu0 0
    %917 = vmatpush1.bf16.msra.mxu0 0
    %918 = vmatprep.subr.bf16.mxu0 0
    %919 = vmatpush1.bf16.msra.mxu0 0
    %920 = vmatprep.subr.bf16.mxu0 0
    %921 = vmatpush1.bf16.msra.mxu0 0
    %922 = vmatprep.subr.bf16.mxu0 0
    %923 = vmatpush1.bf16.msra.mxu0 0
    %924 = vmatprep.subr.bf16.mxu0 0
    %925 = vmatpush1.bf16.msra.mxu0 0
    %926 = vmatprep.subr.bf16.mxu0 0
    %927 = vmatpush1.bf16.msra.mxu0 0
    %928 = vmatprep.subr.bf16.mxu0 0
    %929 = vmatpush1.bf16.msra.mxu0 0
    %930 = vmatprep.subr.bf16.mxu0 0
    %931 = vmatpush1.bf16.msra.mxu0 0
    %932 = vmatprep.mubr.bf16.mxu0 0
    %933 = vmatmul.mubr.bf16.gmra.mrb[0].mxu0 %v898
    %v934 = vpop.f32.mrb[0].mxu0
    %v935 = vadd.f32 0.0, %v934
    %v936 = vpop.f32.mrb[0].mxu0
    %v937 = vpop.f32.mrb[0].mxu0
    %v938 = vpop.f32.mrb[0].mxu0
    %939 = vdwg.mxu0
    %v940 = vadd.f32 %v891, %v935
    %v941 = vpack.c.bf16 %v884, %v884
    %943 = vrot.lane.b32.xlu0 %v941, 96
    %v944 = vpop.permute.xlu0 %943
    %v946 = vsel %vm50, %v944, 0
    %948 = vmatprep.subr.bf16.mxu0 0
    %949 = vmatpush1.bf16.msra.mxu0 %v103
    %950 = vmatprep.subr.bf16.mxu0 0
    %951 = vmatpush1.bf16.msra.mxu0 %v104
    %952 = vmatprep.subr.bf16.mxu0 0
    %953 = vmatpush1.bf16.msra.mxu0 0
    %954 = vmatprep.subr.bf16.mxu0 0
    %955 = vmatpush1.bf16.msra.mxu0 0
    %956 = vmatprep.subr.bf16.mxu0 0
    %957 = vmatpush1.bf16.msra.mxu0 0
    %958 = vmatprep.subr.bf16.mxu0 0
    %959 = vmatpush1.bf16.msra.mxu0 0
    %960 = vmatprep.subr.bf16.mxu0 0
    %961 = vmatpush1.bf16.msra.mxu0 0
    %962 = vmatprep.subr.bf16.mxu0 0
    %963 = vmatpush1.bf16.msra.mxu0 0
    %964 = vmatprep.subr.bf16.mxu0 0
    %965 = vmatpush1.bf16.msra.mxu0 0
    %966 = vmatprep.subr.bf16.mxu0 0
    %967 = vmatpush1.bf16.msra.mxu0 0
    %968 = vmatprep.subr.bf16.mxu0 0
    %969 = vmatpush1.bf16.msra.mxu0 0
    %970 = vmatprep.subr.bf16.mxu0 0
    %971 = vmatpush1.bf16.msra.mxu0 0
    %972 = vmatprep.subr.bf16.mxu0 0
    %973 = vmatpush1.bf16.msra.mxu0 0
    %974 = vmatprep.subr.bf16.mxu0 0
    %975 = vmatpush1.bf16.msra.mxu0 0
    %976 = vmatprep.subr.bf16.mxu0 0
    %977 = vmatpush1.bf16.msra.mxu0 0
    %978 = vmatprep.subr.bf16.mxu0 0
    %979 = vmatpush1.bf16.msra.mxu0 0
    %980 = vmatprep.mubr.bf16.mxu0 0
    %981 = vmatmul.mubr.bf16.gmra.mrb[0].mxu0 %v946
    %v982 = vpop.f32.mrb[0].mxu0
    %v983 = vadd.f32 0.0, %v982
    %v984 = vpop.f32.mrb[0].mxu0
    %v985 = vpop.f32.mrb[0].mxu0
    %v986 = vpop.f32.mrb[0].mxu0
    %987 = vdwg.mxu0
    %v988 = vadd.f32 %v892, %v983
    %v989 = vmax.f32 %v988, 0.0
    %v990 = vmul.f32 %v989, %v153
    %v991 = vsel %vm156, %v990, 0.0
    %992 = vadd.xlane.f32.xlu0 %v991
    %v993 = vpop.xlane.xlu0 %992
    %v994 = vadd.f32 %v993, %v153
    %v995 = vand.u32 2147483647, %v994
    %v996 = vmul.f32 %v995, 0.5
    %v997 = vadd.f32 %v865, %v996
    %v998 = vsub.f32 0.0, %v995
    %v999 = vmul.f32 %v998, 1.442695
    %v1000 = vpow.pop %v999
    %v1001 = vadd.f32 %v1000, 1.0
    %v1002 = vlog2.pop %v1001
    %v1003 = vmul.f32 %v1002, 0.6931472
    %v1004 = vadd.f32 %v997, %v1003
    %v1005 = vxor.u32 %v940, 2147483648
    %v1006 = vmul.f32 %v1005, 1.442695
    %v1007 = vpow.pop %v1006
    %v1008 = vadd.f32 %v1007, 1.0
    %v1009 = vrcp.pop %v1008
    %v1010 = vmul.f32 1.0, %v1009
    %v1011 = vmul.f32 %v1010, 2.0
    %v1012 = vsub.f32 %v1011, 1.0
    %v1013 = vmul.f32 %v1010, %v884
    %1015 = vrot.lane.b32.xlu0 %v1012, 32
    %v1016 = vpop.permute.xlu0 %1015
    %v1018 = vmul.f32 %v1010, %v1016
    %1020 = vrot.lane.b32.xlu0 %v1018, 32
    %v1021 = vpop.permute.xlu0 %1020
    %v1023 = vadd.f32 %v1013, %v1021
    %v1024 = vtanh.pop %v1023
    %1026 = vrot.lane.b32.xlu0 %v1024, 32
    %v1027 = vpop.permute.xlu0 %1026
    %v1029 = vmul.f32 %v1010, %v1027
    %v1030 = vld [vmem:[%s0 + $0x70] sm:$0xff]
    %v1031 = vld [vmem:[%s0 + $0x78] sm:$0xff]
    %v1032 = vpack.c.bf16 %v1029, %v1029
    %1034 = vrot.lane.b32.xlu0 %v1032, 64
    %v1035 = vpop.permute.xlu0 %1034
    %v1037 = vsel %vm50, %v1035, 0
    %1039 = vmatprep.subr.bf16.mxu0 0
    %1040 = vmatpush1.bf16.msra.mxu0 %v46
    %1041 = vmatprep.subr.bf16.mxu0 0
    %1042 = vmatpush1.bf16.msra.mxu0 %v47
    %1043 = vmatprep.subr.bf16.mxu0 0
    %1044 = vmatpush1.bf16.msra.mxu0 0
    %1045 = vmatprep.subr.bf16.mxu0 0
    %1046 = vmatpush1.bf16.msra.mxu0 0
    %1047 = vmatprep.subr.bf16.mxu0 0
    %1048 = vmatpush1.bf16.msra.mxu0 0
    %1049 = vmatprep.subr.bf16.mxu0 0
    %1050 = vmatpush1.bf16.msra.mxu0 0
    %1051 = vmatprep.subr.bf16.mxu0 0
    %1052 = vmatpush1.bf16.msra.mxu0 0
    %1053 = vmatprep.subr.bf16.mxu0 0
    %1054 = vmatpush1.bf16.msra.mxu0 0
    %1055 = vmatprep.subr.bf16.mxu0 0
    %1056 = vmatpush1.bf16.msra.mxu0 0
    %1057 = vmatprep.subr.bf16.mxu0 0
    %1058 = vmatpush1.bf16.msra.mxu0 0
    %1059 = vmatprep.subr.bf16.mxu0 0
    %1060 = vmatpush1.bf16.msra.mxu0 0
    %1061 = vmatprep.subr.bf16.mxu0 0
    %1062 = vmatpush1.bf16.msra.mxu0 0
    %1063 = vmatprep.subr.bf16.mxu0 0
    %1064 = vmatpush1.bf16.msra.mxu0 0
    %1065 = vmatprep.subr.bf16.mxu0 0
    %1066 = vmatpush1.bf16.msra.mxu0 0
    %1067 = vmatprep.subr.bf16.mxu0 0
    %1068 = vmatpush1.bf16.msra.mxu0 0
    %1069 = vmatprep.subr.bf16.mxu0 0
    %1070 = vmatpush1.bf16.msra.mxu0 0
    %1071 = vmatprep.mubr.bf16.mxu0 0
    %1072 = vmatmul.mubr.bf16.gmra.mrb[0].mxu0 %v1037
    %v1073 = vpop.f32.mrb[0].mxu0
    %v1074 = vadd.f32 0.0, %v1073
    %v1075 = vpop.f32.mrb[0].mxu0
    %v1076 = vpop.f32.mrb[0].mxu0
    %v1077 = vpop.f32.mrb[0].mxu0
    %1078 = vdwg.mxu0
    %v1079 = vadd.f32 %v1030, %v1074
    %v1080 = vpack.c.bf16 %v1023, %v1023
    %1082 = vrot.lane.b32.xlu0 %v1080, 96
    %v1083 = vpop.permute.xlu0 %1082
    %v1085 = vsel %vm50, %v1083, 0
    %1087 = vmatprep.subr.bf16.mxu0 0
    %1088 = vmatpush1.bf16.msra.mxu0 %v103
    %1089 = vmatprep.subr.bf16.mxu0 0
    %1090 = vmatpush1.bf16.msra.mxu0 %v104
    %1091 = vmatprep.subr.bf16.mxu0 0
    %1092 = vmatpush1.bf16.msra.mxu0 0
    %1093 = vmatprep.subr.bf16.mxu0 0
    %1094 = vmatpush1.bf16.msra.mxu0 0
    %1095 = vmatprep.subr.bf16.mxu0 0
    %1096 = vmatpush1.bf16.msra.mxu0 0
    %1097 = vmatprep.subr.bf16.mxu0 0
    %1098 = vmatpush1.bf16.msra.mxu0 0
    %1099 = vmatprep.subr.bf16.mxu0 0
    %1100 = vmatpush1.bf16.msra.mxu0 0
    %1101 = vmatprep.subr.bf16.mxu0 0
    %1102 = vmatpush1.bf16.msra.mxu0 0
    %1103 = vmatprep.subr.bf16.mxu0 0
    %1104 = vmatpush1.bf16.msra.mxu0 0
    %1105 = vmatprep.subr.bf16.mxu0 0
    %1106 = vmatpush1.bf16.msra.mxu0 0
    %1107 = vmatprep.subr.bf16.mxu0 0
    %1108 = vmatpush1.bf16.msra.mxu0 0
    %1109 = vmatprep.subr.bf16.mxu0 0
    %1110 = vmatpush1.bf16.msra.mxu0 0
    %1111 = vmatprep.subr.bf16.mxu0 0
    %1112 = vmatpush1.bf16.msra.mxu0 0
    %1113 = vmatprep.subr.bf16.mxu0 0
    %1114 = vmatpush1.bf16.msra.mxu0 0
    %1115 = vmatprep.subr.bf16.mxu0 0
    %1116 = vmatpush1.bf16.msra.mxu0 0
    %1117 = vmatprep.subr.bf16.mxu0 0
    %1118 = vmatpush1.bf16.msra.mxu0 0
    %1119 = vmatprep.mubr.bf16.mxu0 0
    %1120 = vmatmul.mubr.bf16.gmra.mrb[0].mxu0 %v1085
    %v1121 = vpop.f32.mrb[0].mxu0
    %v1122 = vadd.f32 0.0, %v1121
    %v1123 = vpop.f32.mrb[0].mxu0
    %v1124 = vpop.f32.mrb[0].mxu0
    %v1125 = vpop.f32.mrb[0].mxu0
    %1126 = vdwg.mxu0
    %v1127 = vadd.f32 %v1031, %v1122
    %v1128 = vmax.f32 %v1127, 0.0
    %v1129 = vmul.f32 %v1128, %v153
    %v1130 = vsel %vm156, %v1129, 0.0
    %1131 = vadd.xlane.f32.xlu0 %v1130
    %v1132 = vpop.xlane.xlu0 %1131
    %v1133 = vadd.f32 %v1132, %v153
    %v1134 = vand.u32 2147483647, %v1133
    %v1135 = vmul.f32 %v1134, 0.5
    %v1136 = vadd.f32 %v1004, %v1135
    %v1137 = vsub.f32 0.0, %v1134
    %v1138 = vmul.f32 %v1137, 1.442695
    %v1139 = vpow.pop %v1138
    %v1140 = vadd.f32 %v1139, 1.0
    %v1141 = vlog2.pop %v1140
    %v1142 = vmul.f32 %v1141, 0.6931472
    %v1143 = vadd.f32 %v1136, %v1142
    %v1144 = vxor.u32 %v1079, 2147483648
    %v1145 = vmul.f32 %v1144, 1.442695
    %v1146 = vpow.pop %v1145
    %v1147 = vadd.f32 %v1146, 1.0
    %v1148 = vrcp.pop %v1147
    %v1149 = vmul.f32 1.0, %v1148
    %v1150 = vmul.f32 %v1149, 2.0
    %v1151 = vsub.f32 %v1150, 1.0
    %v1152 = vmul.f32 %v1149, %v1023
    %1154 = vrot.lane.b32.xlu0 %v1151, 32
    %v1155 = vpop.permute.xlu0 %1154
    %v1157 = vmul.f32 %v1149, %v1155
    %1159 = vrot.lane.b32.xlu0 %v1157, 32
    %v1160 = vpop.permute.xlu0 %1159
    %v1162 = vadd.f32 %v1152, %v1160
    %v1163 = vld [vmem:[%s4] sm:$0xff]
    %v1164 = vld [vmem:[%s4 + $0x8] sm:$0xff]
    %v1165 = vld [vmem:[%s4 + $0x10] sm:$0xff]
    %v1166 = vld [vmem:[%s4 + $0x18] sm:$0xff]
    %v1167 = vld [vmem:[%s4 + $0x20] sm:$0x1]
    %v1168 = vlaneseq
    %v1169 = vshrl.u32 %v1168, 7
    %v1170 = vsub.s32 0, %v1169
    %v1171 = vrot.slane %v1167, %v1170
    %1173 = vrot.lane.b32.xlu0 %v1162, 96
    %v1174 = vpop.permute.xlu0 %1173
    %v1175 = vsel %vm50, %v1174, 0
    %1177 = vmatprep.subr.mxu0 0.0
    %1178 = vmatpush1.msra.mxu0 %v1163
    %1179 = vmatprep.subr.mxu0 0.0
    %1180 = vmatpush1.msra.mxu0 %v1164
    %1181 = vmatprep.subr.mxu0 0.0
    %1182 = vmatpush1.msra.mxu0 %v1165
    %1183 = vmatprep.subr.mxu0 0.0
    %1184 = vmatpush1.msra.mxu0 %v1166
    %1185 = vmatprep.subr.mxu0 0.0
    %1186 = vmatpush1.msra.mxu0 0.0
    %1187 = vmatprep.subr.mxu0 0.0
    %1188 = vmatpush1.msra.mxu0 0.0
    %1189 = vmatprep.subr.mxu0 0.0
    %1190 = vmatpush1.msra.mxu0 0.0
    %1191 = vmatprep.subr.mxu0 0.0
    %1192 = vmatpush1.msra.mxu0 0.0
    %1193 = vmatprep.subr.mxu0 0.0
    %1194 = vmatpush1.msra.mxu0 0.0
    %1195 = vmatprep.subr.mxu0 0.0
    %1196 = vmatpush1.msra.mxu0 0.0
    %1197 = vmatprep.subr.mxu0 0.0
    %1198 = vmatpush1.msra.mxu0 0.0
    %1199 = vmatprep.subr.mxu0 0.0
    %1200 = vmatpush1.msra.mxu0 0.0
    %1201 = vmatprep.subr.mxu0 0.0
    %1202 = vmatpush1.msra.mxu0 0.0
    %1203 = vmatprep.subr.mxu0 0.0
    %1204 = vmatpush1.msra.mxu0 0.0
    %1205 = vmatprep.subr.mxu0 0.0
    %1206 = vmatpush1.msra.mxu0 0.0
    %1207 = vmatprep.subr.mxu0 0.0
    %1208 = vmatpush1.msra.mxu0 0.0
    %1209 = vmatprep.subr.mxu0 0.0
    %1210 = vmatpush1.msra.mxu0 0.0
    %1211 = vmatprep.subr.mxu0 0.0
    %1212 = vmatpush1.msra.mxu0 0.0
    %1213 = vmatprep.subr.mxu0 0.0
    %1214 = vmatpush1.msra.mxu0 0.0
    %1215 = vmatprep.subr.mxu0 0.0
    %1216 = vmatpush1.msra.mxu0 0.0
    %1217 = vmatprep.subr.mxu0 0.0
    %1218 = vmatpush1.msra.mxu0 0.0
    %1219 = vmatprep.subr.mxu0 0.0
    %1220 = vmatpush1.msra.mxu0 0.0
    %1221 = vmatprep.subr.mxu0 0.0
    %1222 = vmatpush1.msra.mxu0 0.0
    %1223 = vmatprep.subr.mxu0 0.0
    %1224 = vmatpush1.msra.mxu0 0.0
    %1225 = vmatprep.subr.mxu0 0.0
    %1226 = vmatpush1.msra.mxu0 0.0
    %1227 = vmatprep.subr.mxu0 0.0
    %1228 = vmatpush1.msra.mxu0 0.0
    %1229 = vmatprep.subr.mxu0 0.0
    %1230 = vmatpush1.msra.mxu0 0.0
    %1231 = vmatprep.subr.mxu0 0.0
    %1232 = vmatpush1.msra.mxu0 0.0
    %1233 = vmatprep.subr.mxu0 0.0
    %1234 = vmatpush1.msra.mxu0 0.0
    %1235 = vmatprep.subr.mxu0 0.0
    %1236 = vmatpush1.msra.mxu0 0.0
    %1237 = vmatprep.subr.mxu0 0.0
    %1238 = vmatpush1.msra.mxu0 0.0
    %1239 = vmatprep.subr.mxu0 0.0
    %1240 = vmatpush1.msra.mxu0 0.0
    %1241 = vmatprep.mubr.f32.mxu0 0.0
    %1242 = vmatmul.mubr.f32.gmra.mrb[0].mxu0 %v1175
    %v1243 = vpop.f32.mrb[0].mxu0
    %v1244 = vadd.f32 %v1171, %v1243
    %v1245 = vpop.f32.mrb[0].mxu0
    %1246 = vdwg.mxu0
    %v1247 = vmax.f32 %v1244, 0.0
    %v1248 = vld [vmem:[%s5] sm:$0xff]
    %v1249 = vld [vmem:[%s5 + $0x8] sm:$0xff]
    %v1250 = vld [vmem:[%s5 + $0x10] sm:$0xff]
    %v1251 = vld [vmem:[%s5 + $0x18] sm:$0xff]
    %v1252 = vld [vmem:[%s5 + $0x20] sm:$0x1]
    %v1253 = vlaneseq
    %v1254 = vshrl.u32 %v1253, 7
    %v1255 = vsub.s32 0, %v1254
    %v1256 = vrot.slane %v1252, %v1255
    %v1258 = vsel %vm50, %v1247, 0
    %1260 = vmatprep.subr.mxu0 0.0
    %1261 = vmatpush1.msra.mxu0 %v1248
    %1262 = vmatprep.subr.mxu0 0.0
    %1263 = vmatpush1.msra.mxu0 %v1249
    %1264 = vmatprep.subr.mxu0 0.0
    %1265 = vmatpush1.msra.mxu0 %v1250
    %1266 = vmatprep.subr.mxu0 0.0
    %1267 = vmatpush1.msra.mxu0 %v1251
    %1268 = vmatprep.subr.mxu0 0.0
    %1269 = vmatpush1.msra.mxu0 0.0
    %1270 = vmatprep.subr.mxu0 0.0
    %1271 = vmatpush1.msra.mxu0 0.0
    %1272 = vmatprep.subr.mxu0 0.0
    %1273 = vmatpush1.msra.mxu0 0.0
    %1274 = vmatprep.subr.mxu0 0.0
    %1275 = vmatpush1.msra.mxu0 0.0
    %1276 = vmatprep.subr.mxu0 0.0
    %1277 = vmatpush1.msra.mxu0 0.0
    %1278 = vmatprep.subr.mxu0 0.0
    %1279 = vmatpush1.msra.mxu0 0.0
    %1280 = vmatprep.subr.mxu0 0.0
    %1281 = vmatpush1.msra.mxu0 0.0
    %1282 = vmatprep.subr.mxu0 0.0
    %1283 = vmatpush1.msra.mxu0 0.0
    %1284 = vmatprep.subr.mxu0 0.0
    %1285 = vmatpush1.msra.mxu0 0.0
    %1286 = vmatprep.subr.mxu0 0.0
    %1287 = vmatpush1.msra.mxu0 0.0
    %1288 = vmatprep.subr.mxu0 0.0
    %1289 = vmatpush1.msra.mxu0 0.0
    %1290 = vmatprep.subr.mxu0 0.0
    %1291 = vmatpush1.msra.mxu0 0.0
    %1292 = vmatprep.subr.mxu0 0.0
    %1293 = vmatpush1.msra.mxu0 0.0
    %1294 = vmatprep.subr.mxu0 0.0
    %1295 = vmatpush1.msra.mxu0 0.0
    %1296 = vmatprep.subr.mxu0 0.0
    %1297 = vmatpush1.msra.mxu0 0.0
    %1298 = vmatprep.subr.mxu0 0.0
    %1299 = vmatpush1.msra.mxu0 0.0
    %1300 = vmatprep.subr.mxu0 0.0
    %1301 = vmatpush1.msra.mxu0 0.0
    %1302 = vmatprep.subr.mxu0 0.0
    %1303 = vmatpush1.msra.mxu0 0.0
    %1304 = vmatprep.subr.mxu0 0.0
    %1305 = vmatpush1.msra.mxu0 0.0
    %1306 = vmatprep.subr.mxu0 0.0
    %1307 = vmatpush1.msra.mxu0 0.0
    %1308 = vmatprep.subr.mxu0 0.0
    %1309 = vmatpush1.msra.mxu0 0.0
    %1310 = vmatprep.subr.mxu0 0.0
    %1311 = vmatpush1.msra.mxu0 0.0
    %1312 = vmatprep.subr.mxu0 0.0
    %1313 = vmatpush1.msra.mxu0 0.0
    %1314 = vmatprep.subr.mxu0 0.0
    %1315 = vmatpush1.msra.mxu0 0.0
    %1316 = vmatprep.subr.mxu0 0.0
    %1317 = vmatpush1.msra.mxu0 0.0
    %1318 = vmatprep.subr.mxu0 0.0
    %1319 = vmatpush1.msra.mxu0 0.0
    %1320 = vmatprep.subr.mxu0 0.0
    %1321 = vmatpush1.msra.mxu0 0.0
    %1322 = vmatprep.subr.mxu0 0.0
    %1323 = vmatpush1.msra.mxu0 0.0
    %1324 = vmatprep.mubr.f32.mxu0 0.0
    %1325 = vmatmul.mubr.f32.gmra.mrb[0].mxu0 %v1258
    %v1326 = vpop.f32.mrb[0].mxu0
    %v1327 = vadd.f32 %v1256, %v1326
    %v1328 = vpop.f32.mrb[0].mxu0
    %1329 = vdwg.mxu0
    %vm1330 = vcmask 15360
    %v1331 = vsel %vm1330, %v1327, -inf
    %1332 = vmax.xlane.f32.xlu0 %v1331
    %v1333 = vpop.xlane.xlu0 %1332
    %v1334 = vsub.f32 %v1327, %v1333
    %v1335 = vmul.f32 %v1334, 1.442695
    %v1336 = vpow.pop %v1335
    %v1337 = vsel %vm1330, %v1336, 0.0
    %1338 = vadd.xlane.f32.xlu0 %v1337
    %v1339 = vpop.xlane.xlu0 %1338
    %v1340 = vrcp.pop %v1339
    %v1341 = vmul.f32 %v1336, %v1340
    %1342 = vst.msk [vmem:[%s6] sm:$0xff] %vm1330, %v1341
    %1344 = vrot.lane.b32.xlu0 %v1143, 104
    %v1345 = vpop.permute.xlu0 %1344
    %vm1347 = vcmask 7168
    %v1348 = vsel %vm1347, %v1345, 0.0
    %1349 = vadd.xlane.f32.xlu0 %v1348
    %v1350 = vpop.xlane.xlu0 %1349
    %v1351 = vrot.slane %v1350, 4
    %v1352 = vadd.f32 %v1350, %v1351
    %v1353 = vrot.slane %v1352, 2
    %v1354 = vadd.f32 %v1352, %v1353
    %v1355 = vrot.slane %v1354, 1
    %v1356 = vadd.f32 %v1354, %v1355
    %s1357 = vtos %v1356
    %v1358 = vrcp.pop 8.0
    %s1359 = vtos %v1358
    %s1360 = smul.f32 %s1357, %s1359
    %v1361 = vstv %s1360
    %vm1362 = vcmask 0
    %1363 = vst.msk [vmem:[#allocation2] sm:$0x1] %vm1362, %v1361
    // Predicated region
    $region26: #{_forward_impl.1} parent=1 // pred_check
      _
    $region27: #{_forward_impl.1} parent=1 // pred_check_branch
      %1365 = sbr.rel (0) target = $region29
    $region28: #{_forward_impl.1} parent=1 // pred_region
      _
    $region29: #{_forward_impl.1} parent=1 // pred_fallthru
      _
    // Predicated region
    $region30: #{_forward_impl.1} parent=1 // pred_check
      _
    $region31: #{_forward_impl.1} parent=1 // pred_check_branch
      %1367 = sbr.rel (0) target = $region33
    $region32: #{_forward_impl.1} parent=1 // pred_region
      %s1369 = ssub.s32 16, 16
      %1370 = vsyncadd [#allocation3], %s1369
      %s1372 = sshll.u32 [#allocation2], 4
      %s1373 = int_to_ptr.vmem [resolvable:$true] %s1372
      %1375 = dma.vmem_to_hbm [thread:$0]  %s1373, 16, %s7, [#allocation3]
    $region33: #{_forward_impl.1} parent=1 // pred_fallthru
      _
    // Predicated region
    $region34: #{_forward_impl.1} parent=1 // pred_check
      _
    $region35: #{_forward_impl.1} parent=1 // pred_check_branch
      %1377 = sbr.rel (0) target = $region37
    $region36: #{_forward_impl.1} parent=1 // pred_region
      _
    $region37: #{_forward_impl.1} parent=1 // pred_fallthru
      _
    // Predicated region
    $region38: #{_forward_impl.1} parent=1 // pred_check
      _
    $region39: #{_forward_impl.1} parent=1 // pred_check_branch
      %1379 = sbr.rel (0) target = $region41
    $region40: #{_forward_impl.1} parent=1 // pred_region
      %1380 = dma.done [#allocation3], 16
    $region41: #{_forward_impl.1} parent=1 // pred_fallthru
      _
    %1381 = vsyncpa [#allocation3], 1

</llo_original>
